<compile_context>
chip_gen: v7x
topology: tpu7x:2x2x1
jax: 0.10.0
libtpu: 0.0.40
codegen_flags: <defaults>
</compile_context>

<pallas_src>
import jax
import jax.numpy as jnp
from jax.experimental import pallas as pl
from jax.experimental.pallas import tpu as pltpu

# ---------------- configuration (consistent with the module __init__) -------
# config_mlp = [16, 256, 2]; config_clf = [256, 1, 256, 32, 2]
N = 2                 # batch (pairs)
C_IN = 8              # config_mlp[0] // 2  (conv in_channels)
H = W = 8
HW = H * W
FEAT = 256            # relationFeatureSize (hard-coded in module)
D_H = 256             # config_mlp[1]  (RN_MLP hidden size)
N_MLP_HIDDEN = 2      # config_mlp[2]  (RN_MLP n_hidden)
CLF_D_OUT = 1         # config_clf[1]
CLF_D_H1 = 256        # config_clf[2]
CLF_D_H2 = 32         # config_clf[3]
CLF_N_HIDDEN = 2      # config_clf[4]
N_CLF_BLOCKS = 1 + CLF_N_HIDDEN

# --------- packed-slab row offsets (mirrored by prepare_kernel_params) ------
WF_OFF = 0                                  # fused [1x1 conv + first Linear]
WM_OFF = WF_OFF + 2 * C_IN                  # RN_MLP hidden weights
WHT_OFF = WM_OFF + N_MLP_HIDDEN * D_H       # classifier-head weight (wh^T)
W_SLAB_ROWS = WHT_OFF + CLF_D_H2            # = 560 (multiple of 8)

BF_ROW = 0                                  # fused first-Linear bias
BM_OFF = BF_ROW + 1                         # RN_MLP hidden biases
BCH_OFF = BM_OFF + N_MLP_HIDDEN             # CLF hidden biases
BH_ROW = BCH_OFF + N_CLF_BLOCKS             # head bias (cols 0:32)
WO_ROW = BH_ROW + 1                         # wo^T row vector (cols 0:32)
BO_ROW = WO_ROW + 1                         # output bias (col 0)


# ---------------------------- the fused kernel ------------------------------
def make_reid_rn_kernel(nb):
    """Kernel body specialized for `nb` ReID pairs per grid program."""

    def kernel(x_ref, w_ref, b_ref, wch_hbm_ref, o_ref, wch_vmem, clf_sem):
        f32 = jnp.float32
        bf16 = jnp.bfloat16

        # Start per-layer CLF hidden-weight fetches (HBM -> VMEM) immediately
        # so the DMAs overlap the spatial-MLP matmuls; waits are just-in-time
        # per layer so at most slice 0's residual latency is exposed.
        clf_copies = [
            pltpu.make_async_copy(wch_hbm_ref.at[i], wch_vmem.at[i],
                                  clf_sem.at[i])
            for i in range(N_CLF_BLOCKS)
        ]
        for cp in clf_copies:
            cp.start()

        # Fused [1x1 conv on x1/x2 + cat + first RN_MLP Linear]:
        #   (nb*HW, 2*C_IN) @ (2*C_IN, D_H); conv folded into the weight slab.
        wf = w_ref[WF_OFF:WF_OFF + 2 * C_IN, :]
        h = jnp.dot(x_ref[...], wf, preferred_element_type=f32)
        h = jnp.maximum(h + b_ref[BF_ROW:BF_ROW + 1, :], 0.0)

        # RN_MLP hidden stack: Linear(D_H, D_H) + ReLU (dropout = identity).
        for i in range(N_MLP_HIDDEN):
            wm_i = w_ref[WM_OFF + i * D_H:WM_OFF + (i + 1) * D_H, :]
            h = jnp.maximum(
                jnp.dot(h.astype(bf16), wm_i, preferred_element_type=f32)
                + b_ref[BM_OFF + i:BM_OFF + i + 1, :], 0.0)

        # Sum-pool over the HW spatial positions of each pair -> (nb, D_H).
        s = jnp.sum(h.reshape(nb, HW, D_H), axis=1)

        # RN_CLF hidden blocks, per-layer just-in-time weight waits.
        c = s
        for i in range(N_CLF_BLOCKS):
            clf_copies[i].wait()
            c = jnp.maximum(
                jnp.dot(c.astype(bf16), wch_vmem[i], preferred_element_type=f32)
                + b_ref[BCH_OFF + i:BCH_OFF + i + 1, :], 0.0)

        # Classifier head: Linear(D_h1, D_h2) + ReLU using wh^T from the slab
        # (B-transposed matmul), then Linear(D_h2, 1) as a VPU lane reduce.
        wht = w_ref[WHT_OFF:WHT_OFF + CLF_D_H2, :]          # (D_h2, D_h1)
        ch = jax.lax.dot_general(
            c.astype(bf16), wht,
            dimension_numbers=(((1,), (1,)), ((), ())),
            preferred_element_type=f32)
        ch = jnp.maximum(ch + b_ref[BH_ROW:BH_ROW + 1, 0:CLF_D_H2], 0.0)

        wo = b_ref[WO_ROW:WO_ROW + 1, 0:CLF_D_H2]
        y = (jnp.sum(ch * wo, axis=-1, keepdims=True)
             + b_ref[BO_ROW:BO_ROW + 1, 0:1])               # (nb, 1) logits
        sig = 0.5 * (jnp.tanh(0.5 * y) + 1.0)               # stable sigmoid

        # One packed output: [:, :, 0] = probability, [:, :, 1] = logit.
        o_ref[...] = jnp.concatenate([sig, y], axis=-1).reshape(1, nb, 2)

    return kernel


# ------------------------------- wrapper -------------------------------------
def pack_inputs(x1_nchw, x2_nchw):
    """Data-prep: NCHW pair -> (N*HW, 2*C_IN) bf16 activation rows.

    This layout shuffle / concat / cast is pre-baked here (outside the kernel
    call path); in a serving setup it should be produced upstream so the
    per-call path carries no extra layout op."""
    n = x1_nchw.shape[0]
    x1 = jnp.transpose(x1_nchw.reshape(n, C_IN, HW), (0, 2, 1))
    x2 = jnp.transpose(x2_nchw.reshape(n, C_IN, HW), (0, 2, 1))
    x = jnp.concatenate([x1, x2], axis=-1).reshape(n * HW, 2 * C_IN)
    return x.astype(jnp.bfloat16)


def _tc_parallel_programs(n):
    """2 programs (one per TensorCore) on multi-TC chips (v7x); keep the
    collapsed single-program form on 1-TC chips (v5e/v6e) where a grid split
    only adds per-step overhead."""
    try:
        kind = jax.devices()[0].device_kind.lower()
    except Exception:
        return 1
    if "v7" in kind and n % 2 == 0:
        return 2
    return 1


def reid_rn_forward(x_packed, kp, grid_programs=1):
    """x_packed: (N*HW, 2*C_IN) bf16 (see pack_inputs).
    Returns (probs, logits), each (N, CLF_D_OUT) float32."""
    n = x_packed.shape[0] // HW
    g = grid_programs
    assert n % g == 0
    nb = n // g

    out = pl.pallas_call(
        make_reid_rn_kernel(nb),
        out_shape=jax.ShapeDtypeStruct((g, nb, 2), jnp.float32),
        grid_spec=pltpu.PrefetchScalarGridSpec(
            num_scalar_prefetch=0,
            grid=(g,),
            in_specs=[
                # activations: per-program batch slice
                pl.BlockSpec((nb * HW, 2 * C_IN), lambda i: (i, 0)),
                # packed bf16 weight slab (constant block index -> one fetch)
                pl.BlockSpec(kp["w_slab"].shape, lambda i: (0, 0)),
                # packed f32 bias/row-vector slab
                pl.BlockSpec(kp["b_slab"].shape, lambda i: (0, 0)),
                # CLF hidden weights stay in HBM; manual per-layer DMA inside
                pl.BlockSpec(memory_space=pl.ANY),
            ],
            out_specs=pl.BlockSpec((1, nb, 2), lambda i: (i, 0, 0)),
            scratch_shapes=[
                pltpu.VMEM(kp["wch"].shape, jnp.bfloat16),   # CLF landing buf
                pltpu.SemaphoreType.DMA((N_CLF_BLOCKS,)),
            ],
        ),
        compiler_params=pltpu.CompilerParams(
            dimension_semantics=("parallel",)),
        cost_estimate=pl.CostEstimate(
            flops=36_000_000, transcendentals=n, bytes_accessed=750_000),
    )(x_packed, kp["w_slab"], kp["b_slab"], kp["wch"])

    out = out.reshape(n, 2)
    return out[:, 0:1], out[:, 1:2]


# ----------------------------- parameter prep -------------------------------
def _xavier(key, shape):
    fan_in, fan_out = shape[-2], shape[-1]
    limit = (6.0 / (fan_in + fan_out)) ** 0.5
    return jax.random.uniform(key, shape, jnp.float32, -limit, limit)


def _bias(key, shape):
    return jax.random.uniform(key, shape, jnp.float32, -0.05, 0.05)


def make_params(seed=0):
    keys = jax.random.split(jax.random.PRNGKey(seed), 16)
    p = {}
    p["wc"] = _xavier(keys[0], (C_IN, FEAT))            # conv 1x1 (in, out)
    p["bc"] = _bias(keys[1], (1, FEAT))
    # first RN_MLP Linear(2*FEAT -> D_H), split into x1/x2 halves
    p["w0a"] = _xavier(keys[2], (FEAT, D_H))
    p["w0b"] = _xavier(keys[3], (FEAT, D_H))
    p["b0"] = _bias(keys[4], (1, D_H))
    # RN_MLP hidden stack
    p["wm"] = _xavier(keys[5], (N_MLP_HIDDEN, D_H, D_H))
    p["bm"] = _bias(keys[6], (N_MLP_HIDDEN, 1, D_H))
    # RN_CLF hidden stack (1 + n_hidden blocks of Linear(D_H1, D_H1))
    p["wch"] = _xavier(keys[7], (N_CLF_BLOCKS, CLF_D_H1, CLF_D_H1))
    p["bch"] = _bias(keys[8], (N_CLF_BLOCKS, 1, CLF_D_H1))
    # RN_CLF classifier head
    p["wh"] = _xavier(keys[9], (CLF_D_H1, CLF_D_H2))
    p["bh"] = _bias(keys[10], (1, CLF_D_H2))
    p["wo"] = _xavier(keys[11], (CLF_D_H2, CLF_D_OUT))
    p["bo"] = _bias(keys[12], (1, CLF_D_OUT))
    return p


def prepare_kernel_params(p):
    """Fold the 1x1 conv into the first RN_MLP Linear, cast matmul weights to
    bf16 and pack everything small into two slabs (one bf16 weight slab, one
    f32 bias slab) so the kernel needs only 4 input DMAs."""
    bf16 = jnp.bfloat16
    f32 = jnp.float32

    # z = cat(conv(x1), conv(x2)); first Linear(512 -> D_H) with split weights:
    #   h = x1 @ (wc@w0a) + x2 @ (wc@w0b) + (bc@w0a + bc@w0b + b0)
    w_fused = jnp.concatenate([p["wc"] @ p["w0a"], p["wc"] @ p["w0b"]], axis=0)
    b_fused = p["bc"] @ p["w0a"] + p["bc"] @ p["w0b"] + p["b0"]

    wf = w_fused.astype(bf16)                       # (2*C_IN, D_H)
    wm = p["wm"].astype(bf16)                       # (N_MLP_HIDDEN, D_H, D_H)
    wch = p["wch"].astype(bf16)                     # (N_CLF_BLOCKS, D_H1, D_H1)
    wh = p["wh"].astype(bf16)                       # (D_H1, D_H2)
    wht = wh.T                                      # (D_H2, D_H1) -> fits slab
    wo_row = p["wo"].T.astype(f32)                  # (1, D_H2)

    w_slab = jnp.concatenate(
        [wf] + [wm[i] for i in range(N_MLP_HIDDEN)] + [wht], axis=0)
    assert w_slab.shape == (W_SLAB_ROWS, FEAT)

    def pad_row(v):
        v = v.astype(f32)
        return jnp.pad(v, ((0, 0), (0, FEAT - v.shape[1])))

    b_rows = [b_fused.astype(f32)]
    b_rows += [p["bm"][i].astype(f32) for i in range(N_MLP_HIDDEN)]
    b_rows += [p["bch"][i].astype(f32) for i in range(N_CLF_BLOCKS)]
    b_rows += [pad_row(p["bh"]), pad_row(wo_row), pad_row(p["bo"])]
    b_slab = jnp.concatenate(b_rows, axis=0)
    pad = (-b_slab.shape[0]) % 8
    if pad:
        b_slab = jnp.pad(b_slab, ((0, pad), (0, 0)))

    return {
        "w_slab": w_slab,            # (560, 256) bf16  -> one DMA
        "b_slab": b_slab,            # (16, 256)  f32   -> one DMA
        "wch": wch,                  # (3, 256, 256) bf16, stays in HBM
        # individual prepared tensors, kept for the bf16-emulation reference
        "wf": wf, "bf": b_fused.astype(f32),
        "wm": wm, "bm": p["bm"].astype(f32),
        "bch": p["bch"].astype(f32),
        "wh": wh, "bh": p["bh"].astype(f32),
        "wo_row": wo_row, "bo": p["bo"].astype(f32),
    }


# ---------------------------- pure-JAX references ----------------------------
def reference(x1_nchw, x2_nchw, p):
    """f32 reference of the original module math. Returns (logits, probs)."""
    n = x1_nchw.shape[0]
    x1 = jnp.transpose(x1_nchw.reshape(n, C_IN, HW), (0, 2, 1))
    x2 = jnp.transpose(x2_nchw.reshape(n, C_IN, HW), (0, 2, 1))
    h1 = x1 @ p["wc"] + p["bc"]                              # (N, HW, FEAT)
    h2 = x2 @ p["wc"] + p["bc"]
    z = jnp.concatenate([h1, h2], axis=-1)                   # (N, HW, 2*FEAT)
    w0 = jnp.concatenate([p["w0a"], p["w0b"]], axis=0)       # (2*FEAT, D_H)
    h = jax.nn.relu(z @ w0 + p["b0"])
    for i in range(N_MLP_HIDDEN):
        h = jax.nn.relu(h @ p["wm"][i] + p["bm"][i])
    s = h.sum(axis=1)                                        # (N, D_H)
    c = s
    for i in range(N_CLF_BLOCKS):
        c = jax.nn.relu(c @ p["wch"][i] + p["bch"][i])
    c = jax.nn.relu(c @ p["wh"] + p["bh"])
    y = c @ p["wo"] + p["bo"]
    return y, jax.nn.sigmoid(y)


def reference_bf16(x1_nchw, x2_nchw, kp):
    """Pure-JAX emulation of the exact kernel math (bf16 weights/activations,
    f32 accumulation). Returns (logits, probs)."""
    f32 = jnp.float32
    bf16 = jnp.bfloat16
    n = x1_nchw.shape[0]
    x = pack_inputs(x1_nchw, x2_nchw)
    h = jnp.maximum(
        jnp.dot(x, kp["wf"], preferred_element_type=f32) + kp["bf"], 0.0)
    for i in range(N_MLP_HIDDEN):
        h = jnp.maximum(
            jnp.dot(h.astype(bf16), kp["wm"][i], preferred_element_type=f32)
            + kp["bm"][i], 0.0)
    s = h.reshape(n, HW, D_H).sum(axis=1)
    c = s
    for i in range(N_CLF_BLOCKS):
        c = jnp.maximum(
            jnp.dot(c.astype(bf16), kp["wch"][i], preferred_element_type=f32)
            + kp["bch"][i], 0.0)
    ch = jnp.maximum(
        jnp.dot(c.astype(bf16), kp["wh"], preferred_element_type=f32)
        + kp["bh"], 0.0)
    y = jnp.sum(ch * kp["wo_row"], axis=-1, keepdims=True) + kp["bo"]
    return y, 0.5 * (jnp.tanh(0.5 * y) + 1.0)


# ---------------------------------- main -------------------------------------
if __name__ == "__main__":
    key = jax.random.PRNGKey(0)
    k1, k2 = jax.random.split(key)
    # Original conv inputs are NCHW: (N, C_IN, H, W)
    x1_nchw = jax.random.normal(k1, (N, C_IN, H, W), jnp.float32)
    x2_nchw = jax.random.normal(k2, (N, C_IN, H, W), jnp.float32)

    params = make_params(seed=0)
    kparams = prepare_kernel_params(params)

    g = _tc_parallel_programs(N)
    fwd = jax.jit(
        lambda a, b, kp: reid_rn_forward(pack_inputs(a, b), kp,
                                         grid_programs=g))

    probs, logits = jax.block_until_ready(fwd(x1_nchw, x2_nchw, kparams))

    ref_logits, ref_probs = reference(x1_nchw, x2_nchw, params)
    emu_logits, _ = reference_bf16(x1_nchw, x2_nchw, kparams)

    assert probs.shape == (N, CLF_D_OUT) and logits.shape == (N, CLF_D_OUT)
    # Tight structural check: kernel vs a pure-JAX emulation of the exact
    # same bf16/f32 math (catches slab-offset / layer-order / layout bugs).
    assert jnp.allclose(logits, emu_logits, rtol=1e-2, atol=1e-2), \
        (logits, emu_logits)
    # Looser cross-precision sanity checks against the f32 module reference
    # (bf16 weight rounding legitimately perturbs the logits slightly).
    assert jnp.allclose(logits, ref_logits, rtol=1e-1, atol=5e-1), \
        (logits, ref_logits)
    assert jnp.allclose(probs, ref_probs, atol=5e-2), (probs, ref_probs)

    print("KERNEL_OK")
</pallas_src>

<mosaic_0001>
module attributes {stable_mosaic.version = 11 : i64} {
  func.func @kernel(%arg0: i32, %arg1: memref<128x16xbf16, #tpu.memory_space<vmem>>, %arg2: memref<560x256xbf16, #tpu.memory_space<vmem>>, %arg3: memref<16x256xf32, #tpu.memory_space<vmem>>, %arg4: memref<3x256x256xbf16, #tpu.memory_space<any>>, %arg5: memref<1x2x2xf32, #tpu.memory_space<vmem>>, %arg6: memref<3x256x256xbf16, #tpu.memory_space<vmem>>, %arg7: memref<3x!tpu.dma_semaphore, #tpu.memory_space<semaphore_mem>>) attributes {dimension_semantics = [#tpu.dimension_semantics<parallel>], iteration_bounds = array<i64: 1>, scalar_prefetch = 0 : i64, scratch_operands = 2 : i64, tpu.core_type = #tpu.core_type<tc>, window_params = [{transform_indices = @transform_0, window_bounds = array<i64: 128, 16>}, {pipeline_mode = #tpu.pipeline_mode<synchronous>, transform_indices = @transform_1, window_bounds = array<i64: 560, 256>}, {pipeline_mode = #tpu.pipeline_mode<synchronous>, transform_indices = @transform_2, window_bounds = array<i64: 16, 256>}, {}, {transform_indices = @transform_4, window_bounds = array<i64: 1, 2, 2>}]} {
    %c0_i32 = arith.constant 0 : i32
    %c0_i32_0 = arith.constant 0 : i32
    %c0_i32_1 = arith.constant 0 : i32
    %c0_i32_2 = arith.constant 0 : i32
    %c0_i32_3 = arith.constant 0 : i32
    %0 = tpu.memref_slice %arg4[%c0_i32, %c0_i32_2, %c0_i32_3] : memref<3x256x256xbf16, #tpu.memory_space<any>> -> memref<1x256x256xbf16, #tpu.memory_space<any>>
    %1 = tpu.memref_squeeze %0 : memref<1x256x256xbf16, #tpu.memory_space<any>> -> memref<256x256xbf16, #tpu.memory_space<any>>
    %c0_i32_4 = arith.constant 0 : i32
    %c0_i32_5 = arith.constant 0 : i32
    %2 = tpu.memref_slice %arg6[%c0_i32_0, %c0_i32_4, %c0_i32_5] : memref<3x256x256xbf16, #tpu.memory_space<vmem>> -> memref<1x256x256xbf16, #tpu.memory_space<vmem>>
    %3 = tpu.memref_squeeze %2 : memref<1x256x256xbf16, #tpu.memory_space<vmem>> -> memref<256x256xbf16, #tpu.memory_space<vmem>>
    %4 = tpu.memref_slice %arg7[%c0_i32_1] : memref<3x!tpu.dma_semaphore, #tpu.memory_space<semaphore_mem>> -> memref<1x!tpu.dma_semaphore, #tpu.memory_space<semaphore_mem>>
    %5 = tpu.memref_squeeze %4 : memref<1x!tpu.dma_semaphore, #tpu.memory_space<semaphore_mem>> -> memref<!tpu.dma_semaphore, #tpu.memory_space<semaphore_mem>>
    tpu.enqueue_dma source(%1 : memref<256x256xbf16, #tpu.memory_space<any>>) target(%3 : memref<256x256xbf16, #tpu.memory_space<vmem>>) target_semaphore(%5 : memref<!tpu.dma_semaphore, #tpu.memory_space<semaphore_mem>>)
    %c1_i32 = arith.constant 1 : i32
    %c1_i32_6 = arith.constant 1 : i32
    %c1_i32_7 = arith.constant 1 : i32
    %c0_i32_8 = arith.constant 0 : i32
    %c0_i32_9 = arith.constant 0 : i32
    %6 = tpu.memref_slice %arg4[%c1_i32, %c0_i32_8, %c0_i32_9] : memref<3x256x256xbf16, #tpu.memory_space<any>> -> memref<1x256x256xbf16, #tpu.memory_space<any>>
    %7 = tpu.memref_squeeze %6 : memref<1x256x256xbf16, #tpu.memory_space<any>> -> memref<256x256xbf16, #tpu.memory_space<any>>
    %c0_i32_10 = arith.constant 0 : i32
    %c0_i32_11 = arith.constant 0 : i32
    %8 = tpu.memref_slice %arg6[%c1_i32_6, %c0_i32_10, %c0_i32_11] : memref<3x256x256xbf16, #tpu.memory_space<vmem>> -> memref<1x256x256xbf16, #tpu.memory_space<vmem>>
    %9 = tpu.memref_squeeze %8 : memref<1x256x256xbf16, #tpu.memory_space<vmem>> -> memref<256x256xbf16, #tpu.memory_space<vmem>>
    %10 = tpu.memref_slice %arg7[%c1_i32_7] : memref<3x!tpu.dma_semaphore, #tpu.memory_space<semaphore_mem>> -> memref<1x!tpu.dma_semaphore, #tpu.memory_space<semaphore_mem>>
    %11 = tpu.memref_squeeze %10 : memref<1x!tpu.dma_semaphore, #tpu.memory_space<semaphore_mem>> -> memref<!tpu.dma_semaphore, #tpu.memory_space<semaphore_mem>>
    tpu.enqueue_dma source(%7 : memref<256x256xbf16, #tpu.memory_space<any>>) target(%9 : memref<256x256xbf16, #tpu.memory_space<vmem>>) target_semaphore(%11 : memref<!tpu.dma_semaphore, #tpu.memory_space<semaphore_mem>>)
    %c2_i32 = arith.constant 2 : i32
    %c2_i32_12 = arith.constant 2 : i32
    %c2_i32_13 = arith.constant 2 : i32
    %c0_i32_14 = arith.constant 0 : i32
    %c0_i32_15 = arith.constant 0 : i32
    %12 = tpu.memref_slice %arg4[%c2_i32, %c0_i32_14, %c0_i32_15] : memref<3x256x256xbf16, #tpu.memory_space<any>> -> memref<1x256x256xbf16, #tpu.memory_space<any>>
    %13 = tpu.memref_squeeze %12 : memref<1x256x256xbf16, #tpu.memory_space<any>> -> memref<256x256xbf16, #tpu.memory_space<any>>
    %c0_i32_16 = arith.constant 0 : i32
    %c0_i32_17 = arith.constant 0 : i32
    %14 = tpu.memref_slice %arg6[%c2_i32_12, %c0_i32_16, %c0_i32_17] : memref<3x256x256xbf16, #tpu.memory_space<vmem>> -> memref<1x256x256xbf16, #tpu.memory_space<vmem>>
    %15 = tpu.memref_squeeze %14 : memref<1x256x256xbf16, #tpu.memory_space<vmem>> -> memref<256x256xbf16, #tpu.memory_space<vmem>>
    %16 = tpu.memref_slice %arg7[%c2_i32_13] : memref<3x!tpu.dma_semaphore, #tpu.memory_space<semaphore_mem>> -> memref<1x!tpu.dma_semaphore, #tpu.memory_space<semaphore_mem>>
    %17 = tpu.memref_squeeze %16 : memref<1x!tpu.dma_semaphore, #tpu.memory_space<semaphore_mem>> -> memref<!tpu.dma_semaphore, #tpu.memory_space<semaphore_mem>>
    tpu.enqueue_dma source(%13 : memref<256x256xbf16, #tpu.memory_space<any>>) target(%15 : memref<256x256xbf16, #tpu.memory_space<vmem>>) target_semaphore(%17 : memref<!tpu.dma_semaphore, #tpu.memory_space<semaphore_mem>>)
    %c0 = arith.constant 0 : index
    %c0_18 = arith.constant 0 : index
    %18 = vector.load %arg2[%c0, %c0_18] : memref<560x256xbf16, #tpu.memory_space<vmem>>, vector<16x256xbf16>
    %c0_19 = arith.constant 0 : index
    %c0_20 = arith.constant 0 : index
    %19 = vector.load %arg1[%c0_19, %c0_20] : memref<128x16xbf16, #tpu.memory_space<vmem>>, vector<128x16xbf16>
    %cst = arith.constant dense<0.000000e+00> : vector<128x256xf32>
    %20 = tpu.matmul %19, %18, %cst {dimension_numbers = #tpu.dot_dimension_numbers<[1], [0], [0], [1], [0, 0, 1, 1], [], []>} : vector<128x16xbf16>, vector<16x256xbf16>, vector<128x256xf32> -> vector<128x256xf32>
    %c0_21 = arith.constant 0 : index
    %c0_22 = arith.constant 0 : index
    %21 = vector.load %arg3[%c0_21, %c0_22] : memref<16x256xf32, #tpu.memory_space<vmem>>, vector<1x256xf32>
    %22 = vector.broadcast %21 : vector<1x256xf32> to vector<128x256xf32>
    %23 = arith.addf %20, %22 : vector<128x256xf32>
    %cst_23 = arith.constant 0.000000e+00 : f32
    %24 = vector.broadcast %cst_23 : f32 to vector<128x256xf32>
    %25 = arith.maximumf %23, %24 : vector<128x256xf32>
    %c16 = arith.constant 16 : index
    %c0_24 = arith.constant 0 : index
    %26 = vector.load %arg2[%c16, %c0_24] : memref<560x256xbf16, #tpu.memory_space<vmem>>, vector<256x256xbf16>
    %27 = arith.truncf %25 : vector<128x256xf32> to vector<128x256xbf16>
    %cst_25 = arith.constant dense<0.000000e+00> : vector<128x256xf32>
    %28 = tpu.matmul %27, %26, %cst_25 {dimension_numbers = #tpu.dot_dimension_numbers<[1], [0], [0], [1], [0, 0, 1, 1], [], []>} : vector<128x256xbf16>, vector<256x256xbf16>, vector<128x256xf32> -> vector<128x256xf32>
    %c1 = arith.constant 1 : index
    %c0_26 = arith.constant 0 : index
    %29 = vector.load %arg3[%c1, %c0_26] : memref<16x256xf32, #tpu.memory_space<vmem>>, vector<1x256xf32>
    %30 = vector.broadcast %29 : vector<1x256xf32> to vector<128x256xf32>
    %31 = arith.addf %28, %30 : vector<128x256xf32>
    %cst_27 = arith.constant 0.000000e+00 : f32
    %32 = vector.broadcast %cst_27 : f32 to vector<128x256xf32>
    %33 = arith.maximumf %31, %32 : vector<128x256xf32>
    %c272 = arith.constant 272 : index
    %c0_28 = arith.constant 0 : index
    %34 = vector.load %arg2[%c272, %c0_28] : memref<560x256xbf16, #tpu.memory_space<vmem>>, vector<256x256xbf16>
    %35 = arith.truncf %33 : vector<128x256xf32> to vector<128x256xbf16>
    %cst_29 = arith.constant dense<0.000000e+00> : vector<128x256xf32>
    %36 = tpu.matmul %35, %34, %cst_29 {dimension_numbers = #tpu.dot_dimension_numbers<[1], [0], [0], [1], [0, 0, 1, 1], [], []>} : vector<128x256xbf16>, vector<256x256xbf16>, vector<128x256xf32> -> vector<128x256xf32>
    %c2 = arith.constant 2 : index
    %c0_30 = arith.constant 0 : index
    %37 = vector.load %arg3[%c2, %c0_30] : memref<16x256xf32, #tpu.memory_space<vmem>>, vector<1x256xf32>
    %38 = vector.broadcast %37 : vector<1x256xf32> to vector<128x256xf32>
    %39 = arith.addf %36, %38 : vector<128x256xf32>
    %cst_31 = arith.constant 0.000000e+00 : f32
    %40 = vector.broadcast %cst_31 : f32 to vector<128x256xf32>
    %41 = arith.maximumf %39, %40 : vector<128x256xf32>
    %42 = vector.shape_cast %41 : vector<128x256xf32> to vector<2x64x256xf32>
    %cst_32 = arith.constant dense<0.000000e+00> : vector<2x256xf32>
    %43 = vector.multi_reduction <add>, %42, %cst_32 [1] : vector<2x64x256xf32> to vector<2x256xf32>
    %c0_i32_33 = arith.constant 0 : i32
    %c0_i32_34 = arith.constant 0 : i32
    %c0_i32_35 = arith.constant 0 : i32
    %c0_i32_36 = arith.constant 0 : i32
    %c0_i32_37 = arith.constant 0 : i32
    %44 = tpu.memref_slice %arg4[%c0_i32_33, %c0_i32_36, %c0_i32_37] : memref<3x256x256xbf16, #tpu.memory_space<any>> -> memref<1x256x256xbf16, #tpu.memory_space<any>>
    %45 = tpu.memref_squeeze %44 : memref<1x256x256xbf16, #tpu.memory_space<any>> -> memref<256x256xbf16, #tpu.memory_space<any>>
    %c0_i32_38 = arith.constant 0 : i32
    %c0_i32_39 = arith.constant 0 : i32
    %46 = tpu.memref_slice %arg6[%c0_i32_34, %c0_i32_38, %c0_i32_39] : memref<3x256x256xbf16, #tpu.memory_space<vmem>> -> memref<1x256x256xbf16, #tpu.memory_space<vmem>>
    %47 = tpu.memref_squeeze %46 : memref<1x256x256xbf16, #tpu.memory_space<vmem>> -> memref<256x256xbf16, #tpu.memory_space<vmem>>
    %48 = tpu.memref_slice %arg7[%c0_i32_35] : memref<3x!tpu.dma_semaphore, #tpu.memory_space<semaphore_mem>> -> memref<1x!tpu.dma_semaphore, #tpu.memory_space<semaphore_mem>>
    %49 = tpu.memref_squeeze %48 : memref<1x!tpu.dma_semaphore, #tpu.memory_space<semaphore_mem>> -> memref<!tpu.dma_semaphore, #tpu.memory_space<semaphore_mem>>
    tpu.wait_dma2 semaphore(%49 : memref<!tpu.dma_semaphore, #tpu.memory_space<semaphore_mem>>) src(%45 : memref<256x256xbf16, #tpu.memory_space<any>>) dst(%47 : memref<256x256xbf16, #tpu.memory_space<vmem>>)
    %50 = arith.truncf %43 : vector<2x256xf32> to vector<2x256xbf16>
    %c0_40 = arith.constant 0 : index
    %c0_41 = arith.constant 0 : index
    %c0_42 = arith.constant 0 : index
    %51 = vector.load %arg6[%c0_40, %c0_41, %c0_42] : memref<3x256x256xbf16, #tpu.memory_space<vmem>>, vector<1x256x256xbf16>
    %52 = vector.shape_cast %51 : vector<1x256x256xbf16> to vector<256x256xbf16>
    %cst_43 = arith.constant dense<0.000000e+00> : vector<2x256xf32>
    %53 = tpu.matmul %50, %52, %cst_43 {dimension_numbers = #tpu.dot_dimension_numbers<[1], [0], [0], [1], [0, 0, 1, 1], [], []>} : vector<2x256xbf16>, vector<256x256xbf16>, vector<2x256xf32> -> vector<2x256xf32>
    %c3 = arith.constant 3 : index
    %c0_44 = arith.constant 0 : index
    %54 = vector.load %arg3[%c3, %c0_44] : memref<16x256xf32, #tpu.memory_space<vmem>>, vector<1x256xf32>
    %55 = vector.broadcast %54 : vector<1x256xf32> to vector<2x256xf32>
    %56 = arith.addf %53, %55 : vector<2x256xf32>
    %cst_45 = arith.constant 0.000000e+00 : f32
    %57 = vector.broadcast %cst_45 : f32 to vector<2x256xf32>
    %58 = arith.maximumf %56, %57 : vector<2x256xf32>
    %c1_i32_46 = arith.constant 1 : i32
    %c1_i32_47 = arith.constant 1 : i32
    %c1_i32_48 = arith.constant 1 : i32
    %c0_i32_49 = arith.constant 0 : i32
    %c0_i32_50 = arith.constant 0 : i32
    %59 = tpu.memref_slice %arg4[%c1_i32_46, %c0_i32_49, %c0_i32_50] : memref<3x256x256xbf16, #tpu.memory_space<any>> -> memref<1x256x256xbf16, #tpu.memory_space<any>>
    %60 = tpu.memref_squeeze %59 : memref<1x256x256xbf16, #tpu.memory_space<any>> -> memref<256x256xbf16, #tpu.memory_space<any>>
    %c0_i32_51 = arith.constant 0 : i32
    %c0_i32_52 = arith.constant 0 : i32
    %61 = tpu.memref_slice %arg6[%c1_i32_47, %c0_i32_51, %c0_i32_52] : memref<3x256x256xbf16, #tpu.memory_space<vmem>> -> memref<1x256x256xbf16, #tpu.memory_space<vmem>>
    %62 = tpu.memref_squeeze %61 : memref<1x256x256xbf16, #tpu.memory_space<vmem>> -> memref<256x256xbf16, #tpu.memory_space<vmem>>
    %63 = tpu.memref_slice %arg7[%c1_i32_48] : memref<3x!tpu.dma_semaphore, #tpu.memory_space<semaphore_mem>> -> memref<1x!tpu.dma_semaphore, #tpu.memory_space<semaphore_mem>>
    %64 = tpu.memref_squeeze %63 : memref<1x!tpu.dma_semaphore, #tpu.memory_space<semaphore_mem>> -> memref<!tpu.dma_semaphore, #tpu.memory_space<semaphore_mem>>
    tpu.wait_dma2 semaphore(%64 : memref<!tpu.dma_semaphore, #tpu.memory_space<semaphore_mem>>) src(%60 : memref<256x256xbf16, #tpu.memory_space<any>>) dst(%62 : memref<256x256xbf16, #tpu.memory_space<vmem>>)
    %65 = arith.truncf %58 : vector<2x256xf32> to vector<2x256xbf16>
    %c1_53 = arith.constant 1 : index
    %c0_54 = arith.constant 0 : index
    %c0_55 = arith.constant 0 : index
    %66 = vector.load %arg6[%c1_53, %c0_54, %c0_55] : memref<3x256x256xbf16, #tpu.memory_space<vmem>>, vector<1x256x256xbf16>
    %67 = vector.shape_cast %66 : vector<1x256x256xbf16> to vector<256x256xbf16>
    %cst_56 = arith.constant dense<0.000000e+00> : vector<2x256xf32>
    %68 = tpu.matmul %65, %67, %cst_56 {dimension_numbers = #tpu.dot_dimension_numbers<[1], [0], [0], [1], [0, 0, 1, 1], [], []>} : vector<2x256xbf16>, vector<256x256xbf16>, vector<2x256xf32> -> vector<2x256xf32>
    %c4 = arith.constant 4 : index
    %c0_57 = arith.constant 0 : index
    %69 = vector.load %arg3[%c4, %c0_57] : memref<16x256xf32, #tpu.memory_space<vmem>>, vector<1x256xf32>
    %70 = vector.broadcast %69 : vector<1x256xf32> to vector<2x256xf32>
    %71 = arith.addf %68, %70 : vector<2x256xf32>
    %cst_58 = arith.constant 0.000000e+00 : f32
    %72 = vector.broadcast %cst_58 : f32 to vector<2x256xf32>
    %73 = arith.maximumf %71, %72 : vector<2x256xf32>
    %c2_i32_59 = arith.constant 2 : i32
    %c2_i32_60 = arith.constant 2 : i32
    %c2_i32_61 = arith.constant 2 : i32
    %c0_i32_62 = arith.constant 0 : i32
    %c0_i32_63 = arith.constant 0 : i32
    %74 = tpu.memref_slice %arg4[%c2_i32_59, %c0_i32_62, %c0_i32_63] : memref<3x256x256xbf16, #tpu.memory_space<any>> -> memref<1x256x256xbf16, #tpu.memory_space<any>>
    %75 = tpu.memref_squeeze %74 : memref<1x256x256xbf16, #tpu.memory_space<any>> -> memref<256x256xbf16, #tpu.memory_space<any>>
    %c0_i32_64 = arith.constant 0 : i32
    %c0_i32_65 = arith.constant 0 : i32
    %76 = tpu.memref_slice %arg6[%c2_i32_60, %c0_i32_64, %c0_i32_65] : memref<3x256x256xbf16, #tpu.memory_space<vmem>> -> memref<1x256x256xbf16, #tpu.memory_space<vmem>>
    %77 = tpu.memref_squeeze %76 : memref<1x256x256xbf16, #tpu.memory_space<vmem>> -> memref<256x256xbf16, #tpu.memory_space<vmem>>
    %78 = tpu.memref_slice %arg7[%c2_i32_61] : memref<3x!tpu.dma_semaphore, #tpu.memory_space<semaphore_mem>> -> memref<1x!tpu.dma_semaphore, #tpu.memory_space<semaphore_mem>>
    %79 = tpu.memref_squeeze %78 : memref<1x!tpu.dma_semaphore, #tpu.memory_space<semaphore_mem>> -> memref<!tpu.dma_semaphore, #tpu.memory_space<semaphore_mem>>
    tpu.wait_dma2 semaphore(%79 : memref<!tpu.dma_semaphore, #tpu.memory_space<semaphore_mem>>) src(%75 : memref<256x256xbf16, #tpu.memory_space<any>>) dst(%77 : memref<256x256xbf16, #tpu.memory_space<vmem>>)
    %80 = arith.truncf %73 : vector<2x256xf32> to vector<2x256xbf16>
    %c2_66 = arith.constant 2 : index
    %c0_67 = arith.constant 0 : index
    %c0_68 = arith.constant 0 : index
    %81 = vector.load %arg6[%c2_66, %c0_67, %c0_68] : memref<3x256x256xbf16, #tpu.memory_space<vmem>>, vector<1x256x256xbf16>
    %82 = vector.shape_cast %81 : vector<1x256x256xbf16> to vector<256x256xbf16>
    %cst_69 = arith.constant dense<0.000000e+00> : vector<2x256xf32>
    %83 = tpu.matmul %80, %82, %cst_69 {dimension_numbers = #tpu.dot_dimension_numbers<[1], [0], [0], [1], [0, 0, 1, 1], [], []>} : vector<2x256xbf16>, vector<256x256xbf16>, vector<2x256xf32> -> vector<2x256xf32>
    %c5 = arith.constant 5 : index
    %c0_70 = arith.constant 0 : index
    %84 = vector.load %arg3[%c5, %c0_70] : memref<16x256xf32, #tpu.memory_space<vmem>>, vector<1x256xf32>
    %85 = vector.broadcast %84 : vector<1x256xf32> to vector<2x256xf32>
    %86 = arith.addf %83, %85 : vector<2x256xf32>
    %cst_71 = arith.constant 0.000000e+00 : f32
    %87 = vector.broadcast %cst_71 : f32 to vector<2x256xf32>
    %88 = arith.maximumf %86, %87 : vector<2x256xf32>
    %c528 = arith.constant 528 : index
    %c0_72 = arith.constant 0 : index
    %89 = vector.load %arg2[%c528, %c0_72] : memref<560x256xbf16, #tpu.memory_space<vmem>>, vector<32x256xbf16>
    %90 = arith.truncf %88 : vector<2x256xf32> to vector<2x256xbf16>
    %cst_73 = arith.constant dense<0.000000e+00> : vector<2x32xf32>
    %91 = tpu.matmul %90, %89, %cst_73 {dimension_numbers = #tpu.dot_dimension_numbers<[1], [1], [0], [0], [0, 0, 1, 0], [], []>} : vector<2x256xbf16>, vector<32x256xbf16>, vector<2x32xf32> -> vector<2x32xf32>
    %c6 = arith.constant 6 : index
    %c0_74 = arith.constant 0 : index
    %92 = vector.load %arg3[%c6, %c0_74] : memref<16x256xf32, #tpu.memory_space<vmem>>, vector<1x32xf32>
    %93 = vector.broadcast %92 : vector<1x32xf32> to vector<2x32xf32>
    %94 = arith.addf %91, %93 : vector<2x32xf32>
    %cst_75 = arith.constant 0.000000e+00 : f32
    %95 = vector.broadcast %cst_75 : f32 to vector<2x32xf32>
    %96 = arith.maximumf %94, %95 : vector<2x32xf32>
    %c7 = arith.constant 7 : index
    %c0_76 = arith.constant 0 : index
    %97 = vector.load %arg3[%c7, %c0_76] : memref<16x256xf32, #tpu.memory_space<vmem>>, vector<1x32xf32>
    %98 = vector.broadcast %97 : vector<1x32xf32> to vector<2x32xf32>
    %99 = arith.mulf %96, %98 : vector<2x32xf32>
    %cst_77 = arith.constant dense<0.000000e+00> : vector<2xf32>
    %100 = vector.multi_reduction <add>, %99, %cst_77 [1] : vector<2x32xf32> to vector<2xf32>
    %101 = vector.shape_cast %100 : vector<2xf32> to vector<2x1xf32>
    %c8 = arith.constant 8 : index
    %c0_78 = arith.constant 0 : index
    %102 = vector.load %arg3[%c8, %c0_78] : memref<16x256xf32, #tpu.memory_space<vmem>>, vector<1x1xf32>
    %103 = vector.broadcast %102 : vector<1x1xf32> to vector<2x1xf32>
    %104 = arith.addf %101, %103 : vector<2x1xf32>
    %cst_79 = arith.constant 5.000000e-01 : f32
    %105 = vector.broadcast %cst_79 : f32 to vector<2x1xf32>
    %106 = arith.mulf %105, %104 : vector<2x1xf32>
    %107 = math.tanh %106 : vector<2x1xf32>
    %cst_80 = arith.constant 1.000000e+00 : f32
    %108 = vector.broadcast %cst_80 : f32 to vector<2x1xf32>
    %109 = arith.addf %107, %108 : vector<2x1xf32>
    %cst_81 = arith.constant 5.000000e-01 : f32
    %110 = vector.broadcast %cst_81 : f32 to vector<2x1xf32>
    %111 = arith.mulf %110, %109 : vector<2x1xf32>
    %112 = tpu.concatenate %111, %104 in 1 : vector<2x1xf32>, vector<2x1xf32> -> vector<2x2xf32>
    %113 = vector.shape_cast %112 : vector<2x2xf32> to vector<1x2x2xf32>
    %c0_82 = arith.constant 0 : index
    %c0_83 = arith.constant 0 : index
    %c0_84 = arith.constant 0 : index
    %114 = vector.load %arg5[%c0_82, %c0_83, %c0_84] : memref<1x2x2xf32, #tpu.memory_space<vmem>>, vector<1x2x2xf32>
    tpu.vector_store %arg5[%c0_82, %c0_83, %c0_84], %113 {strides = array<i32>} : memref<1x2x2xf32, #tpu.memory_space<vmem>>, vector<1x2x2xf32>,
    return
  }
  func.func @transform_0(%arg0: i32) -> (i32, i32) {
    %c0_i32 = arith.constant 0 : i32
    %c0_i32_0 = arith.constant 0 : i32
    return %arg0, %c0_i32 : i32, i32
  }
  func.func @transform_1(%arg0: i32) -> (i32, i32) {
    %c0_i32 = arith.constant 0 : i32
    %c0_i32_0 = arith.constant 0 : i32
    %c0_i32_1 = arith.constant 0 : i32
    return %c0_i32, %c0_i32_0 : i32, i32
  }
  func.func @transform_2(%arg0: i32) -> (i32, i32) {
    %c0_i32 = arith.constant 0 : i32
    %c0_i32_0 = arith.constant 0 : i32
    %c0_i32_1 = arith.constant 0 : i32
    return %c0_i32, %c0_i32_0 : i32, i32
  }
  func.func @transform_4(%arg0: i32) -> (i32, i32, i32) {
    %c0_i32 = arith.constant 0 : i32
    %c0_i32_0 = arith.constant 0 : i32
    %c0_i32_1 = arith.constant 0 : i32
    return %arg0, %c0_i32, %c0_i32_0 : i32, i32, i32
  }
}

</mosaic_0001>

<llo_original>
// kernel: _lambda_.1
$region0: #{_lambda_.1}
  #allocation0 [shape = 'u32[]', space=smem, size = 0x4, offset = 0x4, fixed_abs, tag = 'smem constant byte address 0x4 - core index']
  #allocation1 [shape = 'u32[144,128]{1,0:T(1,128)}', space=vmem, size = 0x12000, scoped, tag = 'internal scratch']
  #allocation2 [shape = 'bf16[3,256,256]{2,1,0:T(16,128)(2,1)}', space=vmem, size = 0x60000, scoped, tag = 'scratch operand']
  #allocation3 [shape = 's32[3]{0}', space=sflag, size = 0xc, scoped, tag = 'scratch operand']
  #allocation4 [shape = 's32[]', space=sflag, size = 0x4, offset = 0, fixed_abs, tag = 'sflag constant byte address 0x0 - dummy sync flag']
  #allocation6 [shape = 's32[]', space=sflag, size = 0x4, offset = 0, fixed_abs, tag = 'sflag constant byte address 0x0 - dummy sync flag']
  #allocation8 [shape = 's32[]', space=sflag, size = 0x4, offset = 0, fixed_abs, tag = 'sflag constant byte address 0x0 - dummy sync flag']
  %s0 = inlined_call_operand.vmem [shape: bf16[128,16], index: 0, kind: input, shape index: {}]
  %s1 = inlined_call_operand.vmem [shape: bf16[560,256], index: 1, kind: input, shape index: {}]
  %s2 = inlined_call_operand.vmem [shape: f32[16,256], index: 2, kind: input, shape index: {}]
  %s3 = inlined_call_operand.hbm [shape: bf16[3,256,256], index: 3, kind: input, shape index: {}]
  %s4 = inlined_call_operand.vmem [shape: f32[1,2,2], index: 4, kind: output, shape index: {}]
  %s5 = sld [smem:[#allocation0]]
  $region22: #{_lambda_.1} parent=0
    _
  %s7 = ssub.s32 1, %s5
  %s8 = scalar_select 0, %s7, %s5
  $region1: #{_lambda_.1} parent=0
    #allocation5 [shape = 'u32[9]{0}', space=smem, size = 0x24, scoped, tag = 'DMA stride descriptor']
    #allocation7 [shape = 'u32[9]{0}', space=smem, size = 0x24, scoped, tag = 'DMA stride descriptor']
    #allocation9 [shape = 'u32[9]{0}', space=smem, size = 0x24, scoped, tag = 'DMA stride descriptor']
    // Predicated region
    $region2: #{_lambda_.1} parent=1 // pred_check
      _
    $region3: #{_lambda_.1} parent=1 // pred_check_branch
      %10 = sbr.rel (0) target = $region5
    $region4: #{_lambda_.1} parent=1 // pred_region
      _
    $region5: #{_lambda_.1} parent=1 // pred_fallthru
      _
    // Predicated region
    $region6: #{_lambda_.1} parent=1 // pred_check
      _
    $region7: #{_lambda_.1} parent=1 // pred_check_branch
      %12 = sbr.rel (0) target = $region9
    $region8: #{_lambda_.1} parent=1 // pred_region
      _
    $region9: #{_lambda_.1} parent=1 // pred_fallthru
      _
    // Predicated region
    $region10: #{_lambda_.1} parent=1 // pred_check
      _
    $region11: #{_lambda_.1} parent=1 // pred_check_branch
      %14 = sbr.rel (0) target = $region13
    $region12: #{_lambda_.1} parent=1 // pred_region
      _
    $region13: #{_lambda_.1} parent=1 // pred_fallthru
      _
    %s17 = sshll.u32 1, 14
    %s18 = sxor.u32 4294967295, %s17
    %s20 = sld [smem:[#allocation0]]
    %s21 = sadd.s32 2, %s20
    %s23 = sshll.u32 7, 26
    %s24 = sxor.u32 4294967295, %s23
    %s25 = sand.u32 0, %s24
    %s26 = sshll.u32 %s21, 26
    %s27 = sor.u32 %s25, %s26
    %s28 = sshll.u32 [#allocation2], 4
    %s29 = int_to_ptr.vmem [resolvable:$true] %s28
    %32 = sst [smem:[#allocation5]] 256
    %s33 = scalar_lea.smem [#allocation5], 1
    %34 = sst [smem:[%s33]] 256
    %s35 = scalar_lea.smem [#allocation5], 2
    %36 = sst [smem:[%s35]] 2
    %s37 = scalar_lea.smem [#allocation5], 3
    %38 = sst [smem:[%s37]] 64
    %s39 = scalar_lea.smem [#allocation5], 4
    %40 = sst [smem:[%s39]] 128
    %s41 = scalar_lea.smem [#allocation5], 5
    %42 = sst [smem:[%s41]] 2
    %s43 = scalar_lea.smem [#allocation5], 6
    %44 = sst [smem:[%s43]] 128
    %s45 = scalar_lea.smem [#allocation5], 7
    %46 = sst [smem:[%s45]] 64
    %s47 = scalar_lea.smem [#allocation5], 8
    %48 = sst [smem:[%s47]] 4
    %50 = dma.general %s3, 4096, %s29, [#allocation3], [#allocation4], [#allocation5], %s27, 0
    %s51 = scalar_lea.hbm %s3, 4096
    %s52 = scalar_lea.vmem [#allocation2], 256
    %s53 = scalar_lea.sflag [#allocation3], 1
    %s55 = sshll.u32 1, 14
    %s56 = sxor.u32 4294967295, %s55
    %s58 = sadd.s32 2, %s20
    %s60 = sshll.u32 7, 26
    %s61 = sxor.u32 4294967295, %s60
    %s62 = sand.u32 0, %s61
    %s63 = sshll.u32 %s58, 26
    %s64 = sor.u32 %s62, %s63
    %s65 = sshll.u32 %s52, 4
    %s66 = int_to_ptr.vmem [resolvable:$true] %s65
    %69 = sst [smem:[#allocation7]] 256
    %s70 = scalar_lea.smem [#allocation7], 1
    %71 = sst [smem:[%s70]] 256
    %s72 = scalar_lea.smem [#allocation7], 2
    %73 = sst [smem:[%s72]] 2
    %s74 = scalar_lea.smem [#allocation7], 3
    %75 = sst [smem:[%s74]] 64
    %s76 = scalar_lea.smem [#allocation7], 4
    %77 = sst [smem:[%s76]] 128
    %s78 = scalar_lea.smem [#allocation7], 5
    %79 = sst [smem:[%s78]] 2
    %s80 = scalar_lea.smem [#allocation7], 6
    %81 = sst [smem:[%s80]] 128
    %s82 = scalar_lea.smem [#allocation7], 7
    %83 = sst [smem:[%s82]] 64
    %s84 = scalar_lea.smem [#allocation7], 8
    %85 = sst [smem:[%s84]] 4
    %87 = dma.general %s51, 4096, %s66, %s53, [#allocation6], [#allocation7], %s64, 0
    %s88 = scalar_lea.hbm %s3, 8192
    %s89 = scalar_lea.vmem [#allocation2], 512
    %s90 = scalar_lea.sflag [#allocation3], 2
    %s92 = sshll.u32 1, 14
    %s93 = sxor.u32 4294967295, %s92
    %s95 = sadd.s32 2, %s20
    %s97 = sshll.u32 7, 26
    %s98 = sxor.u32 4294967295, %s97
    %s99 = sand.u32 0, %s98
    %s100 = sshll.u32 %s95, 26
    %s101 = sor.u32 %s99, %s100
    %s102 = sshll.u32 %s89, 4
    %s103 = int_to_ptr.vmem [resolvable:$true] %s102
    %106 = sst [smem:[#allocation9]] 256
    %s107 = scalar_lea.smem [#allocation9], 1
    %108 = sst [smem:[%s107]] 256
    %s109 = scalar_lea.smem [#allocation9], 2
    %110 = sst [smem:[%s109]] 2
    %s111 = scalar_lea.smem [#allocation9], 3
    %112 = sst [smem:[%s111]] 64
    %s113 = scalar_lea.smem [#allocation9], 4
    %114 = sst [smem:[%s113]] 128
    %s115 = scalar_lea.smem [#allocation9], 5
    %116 = sst [smem:[%s115]] 2
    %s117 = scalar_lea.smem [#allocation9], 6
    %118 = sst [smem:[%s117]] 128
    %s119 = scalar_lea.smem [#allocation9], 7
    %120 = sst [smem:[%s119]] 64
    %s121 = scalar_lea.smem [#allocation9], 8
    %122 = sst [smem:[%s121]] 4
    %124 = dma.general %s88, 4096, %s103, %s90, [#allocation8], [#allocation9], %s101, 0
    %v125 = vld [vmem:[%s1] sm:$0xff]
    %v126 = vld [vmem:[%s1 + $0x8] sm:$0xff]
    %v127 = vld [vmem:[%s0] sm:$0xf]
    %v128 = vld [vmem:[%s0 + $0x4] sm:$0xf]
    %v129 = vld [vmem:[%s0 + $0x8] sm:$0xf]
    %v130 = vld [vmem:[%s0 + $0xc] sm:$0xf]
    %v131 = vld [vmem:[%s0 + $0x10] sm:$0xf]
    %v132 = vld [vmem:[%s0 + $0x14] sm:$0xf]
    %v133 = vld [vmem:[%s0 + $0x18] sm:$0xf]
    %v134 = vld [vmem:[%s0 + $0x1c] sm:$0xf]
    %v135 = vld [vmem:[%s0 + $0x20] sm:$0xf]
    %v136 = vld [vmem:[%s0 + $0x24] sm:$0xf]
    %v137 = vld [vmem:[%s0 + $0x28] sm:$0xf]
    %v138 = vld [vmem:[%s0 + $0x2c] sm:$0xf]
    %v139 = vld [vmem:[%s0 + $0x30] sm:$0xf]
    %v140 = vld [vmem:[%s0 + $0x34] sm:$0xf]
    %v141 = vld [vmem:[%s0 + $0x38] sm:$0xf]
    %v142 = vld [vmem:[%s0 + $0x3c] sm:$0xf]
    %v143 = vld [vmem:[%s2] ss:$8 sm:$0x3]
    %v145 = vlaneseq
    %v146 = vshrl.u32 %v145, 7
    %v147 = vsub.s32 0, %v146
    %v148 = vrot.slane %v143, %v147
    %v149 = vlaneseq
    %v150 = vshrl.u32 %v149, 7
    %v151 = vsub.s32 1, %v150
    %v152 = vrot.slane %v143, %v151
    %v171 = vunpack.c.l.b16 %v127
    %v172 = vunpack.c.l.b16 %v128
    %v173 = vunpack.c.l.b16 %v129
    %v174 = vunpack.c.l.b16 %v130
    %v175 = vunpack.c.l.b16 %v131
    %v176 = vunpack.c.l.b16 %v132
    %v177 = vunpack.c.l.b16 %v133
    %v178 = vunpack.c.l.b16 %v134
    %v179 = vunpack.c.l.b16 %v135
    %v180 = vunpack.c.l.b16 %v136
    %v181 = vunpack.c.l.b16 %v137
    %v182 = vunpack.c.l.b16 %v138
    %v183 = vunpack.c.l.b16 %v139
    %v184 = vunpack.c.l.b16 %v140
    %v185 = vunpack.c.l.b16 %v141
    %v186 = vunpack.c.l.b16 %v142
    %v187 = vpack.c.b16 %v172, %v171
    %v188 = vpack.c.b16 %v174, %v173
    %v189 = vpack.c.b16 %v176, %v175
    %v190 = vpack.c.b16 %v178, %v177
    %v191 = vpack.c.b16 %v180, %v179
    %v192 = vpack.c.b16 %v182, %v181
    %v193 = vpack.c.b16 %v184, %v183
    %v194 = vpack.c.b16 %v186, %v185
    %v197 = vunpack.c.l.b16 %v125
    %v198 = vunpack.c.h.b16 %v125
    %v199 = vunpack.c.l.b16 %v126
    %v200 = vunpack.c.h.b16 %v126
    %v201 = vpack.c.b16 %v199, %v197
    %v202 = vpack.c.b16 %v200, %v198
    %vm205 = vcmask 130048
    %v207 = vsel %vm205, %v187, 0
    %v210 = vsel %vm205, %v188, 0
    %v213 = vsel %vm205, %v189, 0
    %v216 = vsel %vm205, %v190, 0
    %v219 = vsel %vm205, %v191, 0
    %v222 = vsel %vm205, %v192, 0
    %v225 = vsel %vm205, %v193, 0
    %v228 = vsel %vm205, %v194, 0
    %230 = vmatprep.subr.bf16.mxu0 %v202
    %231 = vmatpush1.bf16.msra.mxu0 %v201
    %232 = vmatprep.subr.bf16.mxu0 0
    %233 = vmatpush1.bf16.msra.mxu0 0
    %234 = vmatprep.subr.bf16.mxu0 0
    %235 = vmatpush1.bf16.msra.mxu0 0
    %236 = vmatprep.subr.bf16.mxu0 0
    %237 = vmatpush1.bf16.msra.mxu0 0
    %238 = vmatprep.subr.bf16.mxu0 0
    %239 = vmatpush1.bf16.msra.mxu0 0
    %240 = vmatprep.subr.bf16.mxu0 0
    %241 = vmatpush1.bf16.msra.mxu0 0
    %242 = vmatprep.subr.bf16.mxu0 0
    %243 = vmatpush1.bf16.msra.mxu0 0
    %244 = vmatprep.subr.bf16.mxu0 0
    %245 = vmatpush1.bf16.msra.mxu0 0
    %246 = vmatprep.subr.bf16.mxu0 0
    %247 = vmatpush1.bf16.msra.mxu0 0
    %248 = vmatprep.subr.bf16.mxu0 0
    %249 = vmatpush1.bf16.msra.mxu0 0
    %250 = vmatprep.subr.bf16.mxu0 0
    %251 = vmatpush1.bf16.msra.mxu0 0
    %252 = vmatprep.subr.bf16.mxu0 0
    %253 = vmatpush1.bf16.msra.mxu0 0
    %254 = vmatprep.subr.bf16.mxu0 0
    %255 = vmatpush1.bf16.msra.mxu0 0
    %256 = vmatprep.subr.bf16.mxu0 0
    %257 = vmatpush1.bf16.msra.mxu0 0
    %258 = vmatprep.subr.bf16.mxu0 0
    %259 = vmatpush1.bf16.msra.mxu0 0
    %260 = vmatprep.subr.bf16.mxu0 0
    %261 = vmatpush1.bf16.msra.mxu0 0
    %262 = vmatprep.mubr.bf16.mxu0 0
    %263 = vmatmul.mubr.bf16.gmra.mrb[0].mxu0 %v207
    %v264 = vpop.f32.mrb[0].mxu0
    %v265 = vadd.f32 %v148, %v264
    %v266 = vpop.f32.mrb[0].mxu0
    %v267 = vadd.f32 %v152, %v266
    %v268 = vpop.f32.mrb[0].mxu0
    %v269 = vadd.f32 %v148, %v268
    %v270 = vpop.f32.mrb[0].mxu0
    %v271 = vadd.f32 %v152, %v270
    %272 = vmatprep.mubr.bf16.mxu0 0
    %273 = vmatmul.mubr.bf16.gmra.mrb[0].mxu0 %v210
    %v274 = vpop.f32.mrb[0].mxu0
    %v275 = vadd.f32 %v148, %v274
    %v276 = vpop.f32.mrb[0].mxu0
    %v277 = vadd.f32 %v152, %v276
    %v278 = vpop.f32.mrb[0].mxu0
    %v279 = vadd.f32 %v148, %v278
    %v280 = vpop.f32.mrb[0].mxu0
    %v281 = vadd.f32 %v152, %v280
    %282 = vmatprep.mubr.bf16.mxu0 0
    %283 = vmatmul.mubr.bf16.gmra.mrb[0].mxu0 %v213
    %v284 = vpop.f32.mrb[0].mxu0
    %v285 = vadd.f32 %v148, %v284
    %v286 = vpop.f32.mrb[0].mxu0
    %v287 = vadd.f32 %v152, %v286
    %v288 = vpop.f32.mrb[0].mxu0
    %v289 = vadd.f32 %v148, %v288
    %v290 = vpop.f32.mrb[0].mxu0
    %v291 = vadd.f32 %v152, %v290
    %292 = vmatprep.mubr.bf16.mxu0 0
    %293 = vmatmul.mubr.bf16.gmra.mrb[0].mxu0 %v216
    %v294 = vpop.f32.mrb[0].mxu0
    %v295 = vadd.f32 %v148, %v294
    %v296 = vpop.f32.mrb[0].mxu0
    %v297 = vadd.f32 %v152, %v296
    %v298 = vpop.f32.mrb[0].mxu0
    %v299 = vadd.f32 %v148, %v298
    %v300 = vpop.f32.mrb[0].mxu0
    %v301 = vadd.f32 %v152, %v300
    %302 = vmatprep.mubr.bf16.mxu0 0
    %303 = vmatmul.mubr.bf16.gmra.mrb[0].mxu0 %v219
    %v304 = vpop.f32.mrb[0].mxu0
    %v305 = vadd.f32 %v148, %v304
    %v306 = vpop.f32.mrb[0].mxu0
    %v307 = vadd.f32 %v152, %v306
    %v308 = vpop.f32.mrb[0].mxu0
    %v309 = vadd.f32 %v148, %v308
    %v310 = vpop.f32.mrb[0].mxu0
    %v311 = vadd.f32 %v152, %v310
    %312 = vmatprep.mubr.bf16.mxu0 0
    %313 = vmatmul.mubr.bf16.gmra.mrb[0].mxu0 %v222
    %v314 = vpop.f32.mrb[0].mxu0
    %v315 = vadd.f32 %v148, %v314
    %v316 = vpop.f32.mrb[0].mxu0
    %v317 = vadd.f32 %v152, %v316
    %v318 = vpop.f32.mrb[0].mxu0
    %v319 = vadd.f32 %v148, %v318
    %v320 = vpop.f32.mrb[0].mxu0
    %v321 = vadd.f32 %v152, %v320
    %322 = vmatprep.mubr.bf16.mxu0 0
    %323 = vmatmul.mubr.bf16.gmra.mrb[0].mxu0 %v225
    %v324 = vpop.f32.mrb[0].mxu0
    %v325 = vadd.f32 %v148, %v324
    %v326 = vpop.f32.mrb[0].mxu0
    %v327 = vadd.f32 %v152, %v326
    %v328 = vpop.f32.mrb[0].mxu0
    %v329 = vadd.f32 %v148, %v328
    %v330 = vpop.f32.mrb[0].mxu0
    %v331 = vadd.f32 %v152, %v330
    %332 = vmatprep.mubr.bf16.mxu0 0
    %333 = vmatmul.mubr.bf16.gmra.mrb[0].mxu0 %v228
    %v334 = vpop.f32.mrb[0].mxu0
    %v335 = vadd.f32 %v148, %v334
    %v336 = vpop.f32.mrb[0].mxu0
    %v337 = vadd.f32 %v152, %v336
    %v338 = vpop.f32.mrb[0].mxu0
    %v339 = vadd.f32 %v148, %v338
    %v340 = vpop.f32.mrb[0].mxu0
    %v341 = vadd.f32 %v152, %v340
    %342 = vdwg.mxu0
    %v343 = vmax.f32 %v265, 0.0
    %v344 = vmax.f32 %v267, 0.0
    %v345 = vmax.f32 %v269, 0.0
    %v346 = vmax.f32 %v271, 0.0
    %v347 = vmax.f32 %v275, 0.0
    %v348 = vmax.f32 %v277, 0.0
    %v349 = vmax.f32 %v279, 0.0
    %v350 = vmax.f32 %v281, 0.0
    %v351 = vmax.f32 %v285, 0.0
    %v352 = vmax.f32 %v287, 0.0
    %v353 = vmax.f32 %v289, 0.0
    %v354 = vmax.f32 %v291, 0.0
    %v355 = vmax.f32 %v295, 0.0
    %v356 = vmax.f32 %v297, 0.0
    %v357 = vmax.f32 %v299, 0.0
    %v358 = vmax.f32 %v301, 0.0
    %v359 = vmax.f32 %v305, 0.0
    %v360 = vmax.f32 %v307, 0.0
    %v361 = vmax.f32 %v309, 0.0
    %v362 = vmax.f32 %v311, 0.0
    %v363 = vmax.f32 %v315, 0.0
    %v364 = vmax.f32 %v317, 0.0
    %v365 = vmax.f32 %v319, 0.0
    %v366 = vmax.f32 %v321, 0.0
    %v367 = vmax.f32 %v325, 0.0
    %v368 = vmax.f32 %v327, 0.0
    %v369 = vmax.f32 %v329, 0.0
    %v370 = vmax.f32 %v331, 0.0
    %v371 = vmax.f32 %v335, 0.0
    %v372 = vmax.f32 %v337, 0.0
    %v373 = vmax.f32 %v339, 0.0
    %v374 = vmax.f32 %v341, 0.0
    %v375 = vld [vmem:[%s1 + $0x10] sm:$0xff]
    %v376 = vld [vmem:[%s1 + $0x18] sm:$0xff]
    %v377 = vld [vmem:[%s1 + $0x20] sm:$0xff]
    %v378 = vld [vmem:[%s1 + $0x28] sm:$0xff]
    %v379 = vld [vmem:[%s1 + $0x30] sm:$0xff]
    %v380 = vld [vmem:[%s1 + $0x38] sm:$0xff]
    %v381 = vld [vmem:[%s1 + $0x40] sm:$0xff]
    %v382 = vld [vmem:[%s1 + $0x48] sm:$0xff]
    %v383 = vld [vmem:[%s1 + $0x50] sm:$0xff]
    %v384 = vld [vmem:[%s1 + $0x58] sm:$0xff]
    %v385 = vld [vmem:[%s1 + $0x60] sm:$0xff]
    %v386 = vld [vmem:[%s1 + $0x68] sm:$0xff]
    %v387 = vld [vmem:[%s1 + $0x70] sm:$0xff]
    %v388 = vld [vmem:[%s1 + $0x78] sm:$0xff]
    %v389 = vld [vmem:[%s1 + $0x80] sm:$0xff]
    %v390 = vld [vmem:[%s1 + $0x88] sm:$0xff]
    %v391 = vld [vmem:[%s1 + $0x90] sm:$0xff]
    %v392 = vld [vmem:[%s1 + $0x98] sm:$0xff]
    %v393 = vld [vmem:[%s1 + $0xa0] sm:$0xff]
    %v394 = vld [vmem:[%s1 + $0xa8] sm:$0xff]
    %v395 = vld [vmem:[%s1 + $0xb0] sm:$0xff]
    %v396 = vld [vmem:[%s1 + $0xb8] sm:$0xff]
    %v397 = vld [vmem:[%s1 + $0xc0] sm:$0xff]
    %v398 = vld [vmem:[%s1 + $0xc8] sm:$0xff]
    %v399 = vld [vmem:[%s1 + $0xd0] sm:$0xff]
    %v400 = vld [vmem:[%s1 + $0xd8] sm:$0xff]
    %v401 = vld [vmem:[%s1 + $0xe0] sm:$0xff]
    %v402 = vld [vmem:[%s1 + $0xe8] sm:$0xff]
    %v403 = vld [vmem:[%s1 + $0xf0] sm:$0xff]
    %v404 = vld [vmem:[%s1 + $0xf8] sm:$0xff]
    %v405 = vld [vmem:[%s1 + $0x100] sm:$0xff]
    %v406 = vld [vmem:[%s1 + $0x108] sm:$0xff]
    %v407 = vpack.c.bf16 %v345, %v343
    %v408 = vpack.c.bf16 %v346, %v344
    %v409 = vpack.c.bf16 %v349, %v347
    %v410 = vpack.c.bf16 %v350, %v348
    %v411 = vpack.c.bf16 %v353, %v351
    %v412 = vpack.c.bf16 %v354, %v352
    %v413 = vpack.c.bf16 %v357, %v355
    %v414 = vpack.c.bf16 %v358, %v356
    %v415 = vpack.c.bf16 %v361, %v359
    %v416 = vpack.c.bf16 %v362, %v360
    %v417 = vpack.c.bf16 %v365, %v363
    %v418 = vpack.c.bf16 %v366, %v364
    %v419 = vpack.c.bf16 %v369, %v367
    %v420 = vpack.c.bf16 %v370, %v368
    %v421 = vpack.c.bf16 %v373, %v371
    %v422 = vpack.c.bf16 %v374, %v372
    %s423 = scalar_lea.vmem %s2, 1
    %v424 = vld [vmem:[%s423] ss:$8 sm:$0x3]
    %v426 = vlaneseq
    %v427 = vshrl.u32 %v426, 7
    %v428 = vsub.s32 0, %v427
    %v429 = vrot.slane %v424, %v428
    %v430 = vlaneseq
    %v431 = vshrl.u32 %v430, 7
    %v432 = vsub.s32 1, %v431
    %v433 = vrot.slane %v424, %v432
    %v468 = vunpack.c.l.b16 %v375
    %v469 = vunpack.c.h.b16 %v375
    %v470 = vunpack.c.l.b16 %v376
    %v471 = vunpack.c.h.b16 %v376
    %v472 = vunpack.c.l.b16 %v377
    %v473 = vunpack.c.h.b16 %v377
    %v474 = vunpack.c.l.b16 %v378
    %v475 = vunpack.c.h.b16 %v378
    %v476 = vunpack.c.l.b16 %v379
    %v477 = vunpack.c.h.b16 %v379
    %v478 = vunpack.c.l.b16 %v380
    %v479 = vunpack.c.h.b16 %v380
    %v480 = vunpack.c.l.b16 %v381
    %v481 = vunpack.c.h.b16 %v381
    %v482 = vunpack.c.l.b16 %v382
    %v483 = vunpack.c.h.b16 %v382
    %v484 = vunpack.c.l.b16 %v383
    %v485 = vunpack.c.h.b16 %v383
    %v486 = vunpack.c.l.b16 %v384
    %v487 = vunpack.c.h.b16 %v384
    %v488 = vunpack.c.l.b16 %v385
    %v489 = vunpack.c.h.b16 %v385
    %v490 = vunpack.c.l.b16 %v386
    %v491 = vunpack.c.h.b16 %v386
    %v492 = vunpack.c.l.b16 %v387
    %v493 = vunpack.c.h.b16 %v387
    %v494 = vunpack.c.l.b16 %v388
    %v495 = vunpack.c.h.b16 %v388
    %v496 = vunpack.c.l.b16 %v389
    %v497 = vunpack.c.h.b16 %v389
    %v498 = vunpack.c.l.b16 %v390
    %v499 = vunpack.c.h.b16 %v390
    %v500 = vunpack.c.l.b16 %v391
    %v501 = vunpack.c.h.b16 %v391
    %v502 = vunpack.c.l.b16 %v392
    %v503 = vunpack.c.h.b16 %v392
    %v504 = vunpack.c.l.b16 %v393
    %v505 = vunpack.c.h.b16 %v393
    %v506 = vunpack.c.l.b16 %v394
    %v507 = vunpack.c.h.b16 %v394
    %v508 = vunpack.c.l.b16 %v395
    %v509 = vunpack.c.h.b16 %v395
    %v510 = vunpack.c.l.b16 %v396
    %v511 = vunpack.c.h.b16 %v396
    %v512 = vunpack.c.l.b16 %v397
    %v513 = vunpack.c.h.b16 %v397
    %v514 = vunpack.c.l.b16 %v398
    %v515 = vunpack.c.h.b16 %v398
    %v516 = vunpack.c.l.b16 %v399
    %v517 = vunpack.c.h.b16 %v399
    %v518 = vunpack.c.l.b16 %v400
    %v519 = vunpack.c.h.b16 %v400
    %v520 = vunpack.c.l.b16 %v401
    %v521 = vunpack.c.h.b16 %v401
    %v522 = vunpack.c.l.b16 %v402
    %v523 = vunpack.c.h.b16 %v402
    %v524 = vunpack.c.l.b16 %v403
    %v525 = vunpack.c.h.b16 %v403
    %v526 = vunpack.c.l.b16 %v404
    %v527 = vunpack.c.h.b16 %v404
    %v528 = vunpack.c.l.b16 %v405
    %v529 = vunpack.c.h.b16 %v405
    %v530 = vunpack.c.l.b16 %v406
    %v531 = vunpack.c.h.b16 %v406
    %v532 = vpack.c.b16 %v470, %v468
    %v533 = vpack.c.b16 %v471, %v469
    %v534 = vpack.c.b16 %v474, %v472
    %v535 = vpack.c.b16 %v475, %v473
    %v536 = vpack.c.b16 %v478, %v476
    %v537 = vpack.c.b16 %v479, %v477
    %v538 = vpack.c.b16 %v482, %v480
    %v539 = vpack.c.b16 %v483, %v481
    %v540 = vpack.c.b16 %v486, %v484
    %v541 = vpack.c.b16 %v487, %v485
    %v542 = vpack.c.b16 %v490, %v488
    %v543 = vpack.c.b16 %v491, %v489
    %v544 = vpack.c.b16 %v494, %v492
    %v545 = vpack.c.b16 %v495, %v493
    %v546 = vpack.c.b16 %v498, %v496
    %v547 = vpack.c.b16 %v499, %v497
    %v548 = vpack.c.b16 %v502, %v500
    %v549 = vpack.c.b16 %v503, %v501
    %v550 = vpack.c.b16 %v506, %v504
    %v551 = vpack.c.b16 %v507, %v505
    %v552 = vpack.c.b16 %v510, %v508
    %v553 = vpack.c.b16 %v511, %v509
    %v554 = vpack.c.b16 %v514, %v512
    %v555 = vpack.c.b16 %v515, %v513
    %v556 = vpack.c.b16 %v518, %v516
    %v557 = vpack.c.b16 %v519, %v517
    %v558 = vpack.c.b16 %v522, %v520
    %v559 = vpack.c.b16 %v523, %v521
    %v560 = vpack.c.b16 %v526, %v524
    %v561 = vpack.c.b16 %v527, %v525
    %v562 = vpack.c.b16 %v530, %v528
    %v563 = vpack.c.b16 %v531, %v529
    %596 = vmatprep.subr.bf16.mxu0 %v533
    %597 = vmatpush1.bf16.msra.mxu0 %v532
    %598 = vmatprep.subr.bf16.mxu0 %v535
    %599 = vmatpush1.bf16.msra.mxu0 %v534
    %600 = vmatprep.subr.bf16.mxu0 %v537
    %601 = vmatpush1.bf16.msra.mxu0 %v536
    %602 = vmatprep.subr.bf16.mxu0 %v539
    %603 = vmatpush1.bf16.msra.mxu0 %v538
    %604 = vmatprep.subr.bf16.mxu0 %v541
    %605 = vmatpush1.bf16.msra.mxu0 %v540
    %606 = vmatprep.subr.bf16.mxu0 %v543
    %607 = vmatpush1.bf16.msra.mxu0 %v542
    %608 = vmatprep.subr.bf16.mxu0 %v545
    %609 = vmatpush1.bf16.msra.mxu0 %v544
    %610 = vmatprep.subr.bf16.mxu0 %v547
    %611 = vmatpush1.bf16.msra.mxu0 %v546
    %612 = vmatprep.subr.bf16.mxu0 %v549
    %613 = vmatpush1.bf16.msra.mxu0 %v548
    %614 = vmatprep.subr.bf16.mxu0 %v551
    %615 = vmatpush1.bf16.msra.mxu0 %v550
    %616 = vmatprep.subr.bf16.mxu0 %v553
    %617 = vmatpush1.bf16.msra.mxu0 %v552
    %618 = vmatprep.subr.bf16.mxu0 %v555
    %619 = vmatpush1.bf16.msra.mxu0 %v554
    %620 = vmatprep.subr.bf16.mxu0 %v557
    %621 = vmatpush1.bf16.msra.mxu0 %v556
    %622 = vmatprep.subr.bf16.mxu0 %v559
    %623 = vmatpush1.bf16.msra.mxu0 %v558
    %624 = vmatprep.subr.bf16.mxu0 %v561
    %625 = vmatpush1.bf16.msra.mxu0 %v560
    %626 = vmatprep.subr.bf16.mxu0 %v563
    %627 = vmatpush1.bf16.msra.mxu0 %v562
    %628 = vmatprep.mubr.bf16.mxu0 %v408
    %629 = vmatmul.mubr.bf16.gmra.mrb[0].mxu0 %v407
    %v630 = vpop.f32.mrb[0].mxu0
    %v631 = vadd.f32 %v429, %v630
    %v632 = vpop.f32.mrb[0].mxu0
    %v633 = vadd.f32 %v433, %v632
    %v634 = vpop.f32.mrb[0].mxu0
    %v635 = vadd.f32 %v429, %v634
    %v636 = vpop.f32.mrb[0].mxu0
    %v637 = vadd.f32 %v433, %v636
    %638 = vmatprep.mubr.bf16.mxu0 %v410
    %639 = vmatmul.mubr.bf16.gmra.mrb[0].mxu0 %v409
    %v640 = vpop.f32.mrb[0].mxu0
    %v641 = vadd.f32 %v429, %v640
    %v642 = vpop.f32.mrb[0].mxu0
    %v643 = vadd.f32 %v433, %v642
    %v644 = vpop.f32.mrb[0].mxu0
    %v645 = vadd.f32 %v429, %v644
    %v646 = vpop.f32.mrb[0].mxu0
    %v647 = vadd.f32 %v433, %v646
    %648 = vmatprep.mubr.bf16.mxu0 %v412
    %649 = vmatmul.mubr.bf16.gmra.mrb[0].mxu0 %v411
    %v650 = vpop.f32.mrb[0].mxu0
    %v651 = vadd.f32 %v429, %v650
    %v652 = vpop.f32.mrb[0].mxu0
    %v653 = vadd.f32 %v433, %v652
    %v654 = vpop.f32.mrb[0].mxu0
    %v655 = vadd.f32 %v429, %v654
    %v656 = vpop.f32.mrb[0].mxu0
    %v657 = vadd.f32 %v433, %v656
    %658 = vmatprep.mubr.bf16.mxu0 %v414
    %659 = vmatmul.mubr.bf16.gmra.mrb[0].mxu0 %v413
    %v660 = vpop.f32.mrb[0].mxu0
    %v661 = vadd.f32 %v429, %v660
    %v662 = vpop.f32.mrb[0].mxu0
    %v663 = vadd.f32 %v433, %v662
    %v664 = vpop.f32.mrb[0].mxu0
    %v665 = vadd.f32 %v429, %v664
    %v666 = vpop.f32.mrb[0].mxu0
    %v667 = vadd.f32 %v433, %v666
    %668 = vmatprep.mubr.bf16.mxu0 %v416
    %669 = vmatmul.mubr.bf16.gmra.mrb[0].mxu0 %v415
    %v670 = vpop.f32.mrb[0].mxu0
    %v671 = vadd.f32 %v429, %v670
    %v672 = vpop.f32.mrb[0].mxu0
    %v673 = vadd.f32 %v433, %v672
    %v674 = vpop.f32.mrb[0].mxu0
    %v675 = vadd.f32 %v429, %v674
    %v676 = vpop.f32.mrb[0].mxu0
    %v677 = vadd.f32 %v433, %v676
    %678 = vmatprep.mubr.bf16.mxu0 %v418
    %679 = vmatmul.mubr.bf16.gmra.mrb[0].mxu0 %v417
    %v680 = vpop.f32.mrb[0].mxu0
    %v681 = vadd.f32 %v429, %v680
    %v682 = vpop.f32.mrb[0].mxu0
    %v683 = vadd.f32 %v433, %v682
    %v684 = vpop.f32.mrb[0].mxu0
    %v685 = vadd.f32 %v429, %v684
    %v686 = vpop.f32.mrb[0].mxu0
    %v687 = vadd.f32 %v433, %v686
    %688 = vmatprep.mubr.bf16.mxu0 %v420
    %689 = vmatmul.mubr.bf16.gmra.mrb[0].mxu0 %v419
    %v690 = vpop.f32.mrb[0].mxu0
    %v691 = vadd.f32 %v429, %v690
    %v692 = vpop.f32.mrb[0].mxu0
    %v693 = vadd.f32 %v433, %v692
    %v694 = vpop.f32.mrb[0].mxu0
    %v695 = vadd.f32 %v429, %v694
    %v696 = vpop.f32.mrb[0].mxu0
    %v697 = vadd.f32 %v433, %v696
    %698 = vmatprep.mubr.bf16.mxu0 %v422
    %699 = vmatmul.mubr.bf16.gmra.mrb[0].mxu0 %v421
    %v700 = vpop.f32.mrb[0].mxu0
    %v701 = vadd.f32 %v429, %v700
    %v702 = vpop.f32.mrb[0].mxu0
    %v703 = vadd.f32 %v433, %v702
    %v704 = vpop.f32.mrb[0].mxu0
    %v705 = vadd.f32 %v429, %v704
    %v706 = vpop.f32.mrb[0].mxu0
    %v707 = vadd.f32 %v433, %v706
    %708 = vdwg.mxu0
    %v709 = vmax.f32 %v631, 0.0
    %v710 = vmax.f32 %v633, 0.0
    %v711 = vmax.f32 %v635, 0.0
    %v712 = vmax.f32 %v637, 0.0
    %v713 = vmax.f32 %v641, 0.0
    %v714 = vmax.f32 %v643, 0.0
    %v715 = vmax.f32 %v645, 0.0
    %v716 = vmax.f32 %v647, 0.0
    %v717 = vmax.f32 %v651, 0.0
    %v718 = vmax.f32 %v653, 0.0
    %v719 = vmax.f32 %v655, 0.0
    %v720 = vmax.f32 %v657, 0.0
    %v721 = vmax.f32 %v661, 0.0
    %v722 = vmax.f32 %v663, 0.0
    %v723 = vmax.f32 %v665, 0.0
    %v724 = vmax.f32 %v667, 0.0
    %v725 = vmax.f32 %v671, 0.0
    %v726 = vmax.f32 %v673, 0.0
    %v727 = vmax.f32 %v675, 0.0
    %v728 = vmax.f32 %v677, 0.0
    %v729 = vmax.f32 %v681, 0.0
    %v730 = vmax.f32 %v683, 0.0
    %v731 = vmax.f32 %v685, 0.0
    %v732 = vmax.f32 %v687, 0.0
    %v733 = vmax.f32 %v691, 0.0
    %v734 = vmax.f32 %v693, 0.0
    %v735 = vmax.f32 %v695, 0.0
    %v736 = vmax.f32 %v697, 0.0
    %v737 = vmax.f32 %v701, 0.0
    %v738 = vmax.f32 %v703, 0.0
    %v739 = vmax.f32 %v705, 0.0
    %v740 = vmax.f32 %v707, 0.0
    %v741 = vld [vmem:[%s1 + $0x110] sm:$0xff]
    %v742 = vld [vmem:[%s1 + $0x118] sm:$0xff]
    %v743 = vld [vmem:[%s1 + $0x120] sm:$0xff]
    %v744 = vld [vmem:[%s1 + $0x128] sm:$0xff]
    %v745 = vld [vmem:[%s1 + $0x130] sm:$0xff]
    %v746 = vld [vmem:[%s1 + $0x138] sm:$0xff]
    %v747 = vld [vmem:[%s1 + $0x140] sm:$0xff]
    %v748 = vld [vmem:[%s1 + $0x148] sm:$0xff]
    %v749 = vld [vmem:[%s1 + $0x150] sm:$0xff]
    %v750 = vld [vmem:[%s1 + $0x158] sm:$0xff]
    %v751 = vld [vmem:[%s1 + $0x160] sm:$0xff]
    %v752 = vld [vmem:[%s1 + $0x168] sm:$0xff]
    %v753 = vld [vmem:[%s1 + $0x170] sm:$0xff]
    %v754 = vld [vmem:[%s1 + $0x178] sm:$0xff]
    %v755 = vld [vmem:[%s1 + $0x180] sm:$0xff]
    %v756 = vld [vmem:[%s1 + $0x188] sm:$0xff]
    %v757 = vld [vmem:[%s1 + $0x190] sm:$0xff]
    %v758 = vld [vmem:[%s1 + $0x198] sm:$0xff]
    %v759 = vld [vmem:[%s1 + $0x1a0] sm:$0xff]
    %v760 = vld [vmem:[%s1 + $0x1a8] sm:$0xff]
    %v761 = vld [vmem:[%s1 + $0x1b0] sm:$0xff]
    %v762 = vld [vmem:[%s1 + $0x1b8] sm:$0xff]
    %v763 = vld [vmem:[%s1 + $0x1c0] sm:$0xff]
    %v764 = vld [vmem:[%s1 + $0x1c8] sm:$0xff]
    %v765 = vld [vmem:[%s1 + $0x1d0] sm:$0xff]
    %v766 = vld [vmem:[%s1 + $0x1d8] sm:$0xff]
    %v767 = vld [vmem:[%s1 + $0x1e0] sm:$0xff]
    %v768 = vld [vmem:[%s1 + $0x1e8] sm:$0xff]
    %v769 = vld [vmem:[%s1 + $0x1f0] sm:$0xff]
    %v770 = vld [vmem:[%s1 + $0x1f8] sm:$0xff]
    %v771 = vld [vmem:[%s1 + $0x200] sm:$0xff]
    %v772 = vld [vmem:[%s1 + $0x208] sm:$0xff]
    %v773 = vpack.c.bf16 %v711, %v709
    %v774 = vpack.c.bf16 %v712, %v710
    %v775 = vpack.c.bf16 %v715, %v713
    %v776 = vpack.c.bf16 %v716, %v714
    %v777 = vpack.c.bf16 %v719, %v717
    %v778 = vpack.c.bf16 %v720, %v718
    %v779 = vpack.c.bf16 %v723, %v721
    %v780 = vpack.c.bf16 %v724, %v722
    %v781 = vpack.c.bf16 %v727, %v725
    %v782 = vpack.c.bf16 %v728, %v726
    %v783 = vpack.c.bf16 %v731, %v729
    %v784 = vpack.c.bf16 %v732, %v730
    %v785 = vpack.c.bf16 %v735, %v733
    %v786 = vpack.c.bf16 %v736, %v734
    %v787 = vpack.c.bf16 %v739, %v737
    %v788 = vpack.c.bf16 %v740, %v738
    %s789 = scalar_lea.vmem %s2, 2
    %v790 = vld [vmem:[%s789] ss:$8 sm:$0x3]
    %v792 = vlaneseq
    %v793 = vshrl.u32 %v792, 7
    %v794 = vsub.s32 0, %v793
    %v795 = vrot.slane %v790, %v794
    %v796 = vlaneseq
    %v797 = vshrl.u32 %v796, 7
    %v798 = vsub.s32 1, %v797
    %v799 = vrot.slane %v790, %v798
    %v834 = vunpack.c.l.b16 %v741
    %v835 = vunpack.c.h.b16 %v741
    %v836 = vunpack.c.l.b16 %v742
    %v837 = vunpack.c.h.b16 %v742
    %v838 = vunpack.c.l.b16 %v743
    %v839 = vunpack.c.h.b16 %v743
    %v840 = vunpack.c.l.b16 %v744
    %v841 = vunpack.c.h.b16 %v744
    %v842 = vunpack.c.l.b16 %v745
    %v843 = vunpack.c.h.b16 %v745
    %v844 = vunpack.c.l.b16 %v746
    %v845 = vunpack.c.h.b16 %v746
    %v846 = vunpack.c.l.b16 %v747
    %v847 = vunpack.c.h.b16 %v747
    %v848 = vunpack.c.l.b16 %v748
    %v849 = vunpack.c.h.b16 %v748
    %v850 = vunpack.c.l.b16 %v749
    %v851 = vunpack.c.h.b16 %v749
    %v852 = vunpack.c.l.b16 %v750
    %v853 = vunpack.c.h.b16 %v750
    %v854 = vunpack.c.l.b16 %v751
    %v855 = vunpack.c.h.b16 %v751
    %v856 = vunpack.c.l.b16 %v752
    %v857 = vunpack.c.h.b16 %v752
    %v858 = vunpack.c.l.b16 %v753
    %v859 = vunpack.c.h.b16 %v753
    %v860 = vunpack.c.l.b16 %v754
    %v861 = vunpack.c.h.b16 %v754
    %v862 = vunpack.c.l.b16 %v755
    %v863 = vunpack.c.h.b16 %v755
    %v864 = vunpack.c.l.b16 %v756
    %v865 = vunpack.c.h.b16 %v756
    %v866 = vunpack.c.l.b16 %v757
    %v867 = vunpack.c.h.b16 %v757
    %v868 = vunpack.c.l.b16 %v758
    %v869 = vunpack.c.h.b16 %v758
    %v870 = vunpack.c.l.b16 %v759
    %v871 = vunpack.c.h.b16 %v759
    %v872 = vunpack.c.l.b16 %v760
    %v873 = vunpack.c.h.b16 %v760
    %v874 = vunpack.c.l.b16 %v761
    %v875 = vunpack.c.h.b16 %v761
    %v876 = vunpack.c.l.b16 %v762
    %v877 = vunpack.c.h.b16 %v762
    %v878 = vunpack.c.l.b16 %v763
    %v879 = vunpack.c.h.b16 %v763
    %v880 = vunpack.c.l.b16 %v764
    %v881 = vunpack.c.h.b16 %v764
    %v882 = vunpack.c.l.b16 %v765
    %v883 = vunpack.c.h.b16 %v765
    %v884 = vunpack.c.l.b16 %v766
    %v885 = vunpack.c.h.b16 %v766
    %v886 = vunpack.c.l.b16 %v767
    %v887 = vunpack.c.h.b16 %v767
    %v888 = vunpack.c.l.b16 %v768
    %v889 = vunpack.c.h.b16 %v768
    %v890 = vunpack.c.l.b16 %v769
    %v891 = vunpack.c.h.b16 %v769
    %v892 = vunpack.c.l.b16 %v770
    %v893 = vunpack.c.h.b16 %v770
    %v894 = vunpack.c.l.b16 %v771
    %v895 = vunpack.c.h.b16 %v771
    %v896 = vunpack.c.l.b16 %v772
    %v897 = vunpack.c.h.b16 %v772
    %v898 = vpack.c.b16 %v836, %v834
    %v899 = vpack.c.b16 %v837, %v835
    %v900 = vpack.c.b16 %v840, %v838
    %v901 = vpack.c.b16 %v841, %v839
    %v902 = vpack.c.b16 %v844, %v842
    %v903 = vpack.c.b16 %v845, %v843
    %v904 = vpack.c.b16 %v848, %v846
    %v905 = vpack.c.b16 %v849, %v847
    %v906 = vpack.c.b16 %v852, %v850
    %v907 = vpack.c.b16 %v853, %v851
    %v908 = vpack.c.b16 %v856, %v854
    %v909 = vpack.c.b16 %v857, %v855
    %v910 = vpack.c.b16 %v860, %v858
    %v911 = vpack.c.b16 %v861, %v859
    %v912 = vpack.c.b16 %v864, %v862
    %v913 = vpack.c.b16 %v865, %v863
    %v914 = vpack.c.b16 %v868, %v866
    %v915 = vpack.c.b16 %v869, %v867
    %v916 = vpack.c.b16 %v872, %v870
    %v917 = vpack.c.b16 %v873, %v871
    %v918 = vpack.c.b16 %v876, %v874
    %v919 = vpack.c.b16 %v877, %v875
    %v920 = vpack.c.b16 %v880, %v878
    %v921 = vpack.c.b16 %v881, %v879
    %v922 = vpack.c.b16 %v884, %v882
    %v923 = vpack.c.b16 %v885, %v883
    %v924 = vpack.c.b16 %v888, %v886
    %v925 = vpack.c.b16 %v889, %v887
    %v926 = vpack.c.b16 %v892, %v890
    %v927 = vpack.c.b16 %v893, %v891
    %v928 = vpack.c.b16 %v896, %v894
    %v929 = vpack.c.b16 %v897, %v895
    %962 = vmatprep.subr.bf16.mxu0 %v899
    %963 = vmatpush1.bf16.msra.mxu0 %v898
    %964 = vmatprep.subr.bf16.mxu0 %v901
    %965 = vmatpush1.bf16.msra.mxu0 %v900
    %966 = vmatprep.subr.bf16.mxu0 %v903
    %967 = vmatpush1.bf16.msra.mxu0 %v902
    %968 = vmatprep.subr.bf16.mxu0 %v905
    %969 = vmatpush1.bf16.msra.mxu0 %v904
    %970 = vmatprep.subr.bf16.mxu0 %v907
    %971 = vmatpush1.bf16.msra.mxu0 %v906
    %972 = vmatprep.subr.bf16.mxu0 %v909
    %973 = vmatpush1.bf16.msra.mxu0 %v908
    %974 = vmatprep.subr.bf16.mxu0 %v911
    %975 = vmatpush1.bf16.msra.mxu0 %v910
    %976 = vmatprep.subr.bf16.mxu0 %v913
    %977 = vmatpush1.bf16.msra.mxu0 %v912
    %978 = vmatprep.subr.bf16.mxu0 %v915
    %979 = vmatpush1.bf16.msra.mxu0 %v914
    %980 = vmatprep.subr.bf16.mxu0 %v917
    %981 = vmatpush1.bf16.msra.mxu0 %v916
    %982 = vmatprep.subr.bf16.mxu0 %v919
    %983 = vmatpush1.bf16.msra.mxu0 %v918
    %984 = vmatprep.subr.bf16.mxu0 %v921
    %985 = vmatpush1.bf16.msra.mxu0 %v920
    %986 = vmatprep.subr.bf16.mxu0 %v923
    %987 = vmatpush1.bf16.msra.mxu0 %v922
    %988 = vmatprep.subr.bf16.mxu0 %v925
    %989 = vmatpush1.bf16.msra.mxu0 %v924
    %990 = vmatprep.subr.bf16.mxu0 %v927
    %991 = vmatpush1.bf16.msra.mxu0 %v926
    %992 = vmatprep.subr.bf16.mxu0 %v929
    %993 = vmatpush1.bf16.msra.mxu0 %v928
    %994 = vmatprep.mubr.bf16.mxu0 %v774
    %995 = vmatmul.mubr.bf16.gmra.mrb[0].mxu0 %v773
    %v996 = vpop.f32.mrb[0].mxu0
    %v997 = vadd.f32 %v795, %v996
    %v998 = vpop.f32.mrb[0].mxu0
    %v999 = vadd.f32 %v799, %v998
    %v1000 = vpop.f32.mrb[0].mxu0
    %v1001 = vadd.f32 %v795, %v1000
    %v1002 = vpop.f32.mrb[0].mxu0
    %v1003 = vadd.f32 %v799, %v1002
    %1004 = vmatprep.mubr.bf16.mxu0 %v776
    %1005 = vmatmul.mubr.bf16.gmra.mrb[0].mxu0 %v775
    %v1006 = vpop.f32.mrb[0].mxu0
    %v1007 = vadd.f32 %v795, %v1006
    %v1008 = vpop.f32.mrb[0].mxu0
    %v1009 = vadd.f32 %v799, %v1008
    %v1010 = vpop.f32.mrb[0].mxu0
    %v1011 = vadd.f32 %v795, %v1010
    %v1012 = vpop.f32.mrb[0].mxu0
    %v1013 = vadd.f32 %v799, %v1012
    %1014 = vmatprep.mubr.bf16.mxu0 %v778
    %1015 = vmatmul.mubr.bf16.gmra.mrb[0].mxu0 %v777
    %v1016 = vpop.f32.mrb[0].mxu0
    %v1017 = vadd.f32 %v795, %v1016
    %v1018 = vpop.f32.mrb[0].mxu0
    %v1019 = vadd.f32 %v799, %v1018
    %v1020 = vpop.f32.mrb[0].mxu0
    %v1021 = vadd.f32 %v795, %v1020
    %v1022 = vpop.f32.mrb[0].mxu0
    %v1023 = vadd.f32 %v799, %v1022
    %1024 = vmatprep.mubr.bf16.mxu0 %v780
    %1025 = vmatmul.mubr.bf16.gmra.mrb[0].mxu0 %v779
    %v1026 = vpop.f32.mrb[0].mxu0
    %v1027 = vadd.f32 %v795, %v1026
    %v1028 = vpop.f32.mrb[0].mxu0
    %v1029 = vadd.f32 %v799, %v1028
    %v1030 = vpop.f32.mrb[0].mxu0
    %v1031 = vadd.f32 %v795, %v1030
    %v1032 = vpop.f32.mrb[0].mxu0
    %v1033 = vadd.f32 %v799, %v1032
    %1034 = vmatprep.mubr.bf16.mxu0 %v782
    %1035 = vmatmul.mubr.bf16.gmra.mrb[0].mxu0 %v781
    %v1036 = vpop.f32.mrb[0].mxu0
    %v1037 = vadd.f32 %v795, %v1036
    %v1038 = vpop.f32.mrb[0].mxu0
    %v1039 = vadd.f32 %v799, %v1038
    %v1040 = vpop.f32.mrb[0].mxu0
    %v1041 = vadd.f32 %v795, %v1040
    %v1042 = vpop.f32.mrb[0].mxu0
    %v1043 = vadd.f32 %v799, %v1042
    %1044 = vmatprep.mubr.bf16.mxu0 %v784
    %1045 = vmatmul.mubr.bf16.gmra.mrb[0].mxu0 %v783
    %v1046 = vpop.f32.mrb[0].mxu0
    %v1047 = vadd.f32 %v795, %v1046
    %v1048 = vpop.f32.mrb[0].mxu0
    %v1049 = vadd.f32 %v799, %v1048
    %v1050 = vpop.f32.mrb[0].mxu0
    %v1051 = vadd.f32 %v795, %v1050
    %v1052 = vpop.f32.mrb[0].mxu0
    %v1053 = vadd.f32 %v799, %v1052
    %1054 = vmatprep.mubr.bf16.mxu0 %v786
    %1055 = vmatmul.mubr.bf16.gmra.mrb[0].mxu0 %v785
    %v1056 = vpop.f32.mrb[0].mxu0
    %v1057 = vadd.f32 %v795, %v1056
    %v1058 = vpop.f32.mrb[0].mxu0
    %v1059 = vadd.f32 %v799, %v1058
    %v1060 = vpop.f32.mrb[0].mxu0
    %v1061 = vadd.f32 %v795, %v1060
    %v1062 = vpop.f32.mrb[0].mxu0
    %v1063 = vadd.f32 %v799, %v1062
    %1064 = vmatprep.mubr.bf16.mxu0 %v788
    %1065 = vmatmul.mubr.bf16.gmra.mrb[0].mxu0 %v787
    %v1066 = vpop.f32.mrb[0].mxu0
    %v1067 = vadd.f32 %v795, %v1066
    %v1068 = vpop.f32.mrb[0].mxu0
    %v1069 = vadd.f32 %v799, %v1068
    %v1070 = vpop.f32.mrb[0].mxu0
    %v1071 = vadd.f32 %v795, %v1070
    %v1072 = vpop.f32.mrb[0].mxu0
    %v1073 = vadd.f32 %v799, %v1072
    %1074 = vdwg.mxu0
    %v1075 = vmax.f32 %v997, 0.0
    %v1076 = vmax.f32 %v999, 0.0
    %v1077 = vmax.f32 %v1001, 0.0
    %v1078 = vmax.f32 %v1003, 0.0
    %v1079 = vmax.f32 %v1007, 0.0
    %v1080 = vmax.f32 %v1009, 0.0
    %v1081 = vmax.f32 %v1011, 0.0
    %v1082 = vmax.f32 %v1013, 0.0
    %v1083 = vmax.f32 %v1017, 0.0
    %v1084 = vmax.f32 %v1019, 0.0
    %v1085 = vmax.f32 %v1021, 0.0
    %v1086 = vmax.f32 %v1023, 0.0
    %v1087 = vmax.f32 %v1027, 0.0
    %v1088 = vmax.f32 %v1029, 0.0
    %v1089 = vmax.f32 %v1031, 0.0
    %v1090 = vmax.f32 %v1033, 0.0
    %v1091 = vmax.f32 %v1037, 0.0
    %v1092 = vmax.f32 %v1039, 0.0
    %v1093 = vmax.f32 %v1041, 0.0
    %v1094 = vmax.f32 %v1043, 0.0
    %v1095 = vmax.f32 %v1047, 0.0
    %v1096 = vmax.f32 %v1049, 0.0
    %v1097 = vmax.f32 %v1051, 0.0
    %v1098 = vmax.f32 %v1053, 0.0
    %v1099 = vmax.f32 %v1057, 0.0
    %v1100 = vmax.f32 %v1059, 0.0
    %v1101 = vmax.f32 %v1061, 0.0
    %v1102 = vmax.f32 %v1063, 0.0
    %v1103 = vmax.f32 %v1067, 0.0
    %v1104 = vmax.f32 %v1069, 0.0
    %v1105 = vmax.f32 %v1071, 0.0
    %v1106 = vmax.f32 %v1073, 0.0
    %v1107 = vadd.f32 %v1075, %v1077
    %v1108 = vadd.f32 %v1107, %v1079
    %v1109 = vadd.f32 %v1108, %v1081
    %v1110 = vadd.f32 %v1109, %v1083
    %v1111 = vadd.f32 %v1110, %v1085
    %v1112 = vadd.f32 %v1111, %v1087
    %v1113 = vadd.f32 %v1112, %v1089
    %v1114 = vrot.slane %v1113, 4
    %v1115 = vadd.f32 %v1113, %v1114
    %v1116 = vrot.slane %v1115, 2
    %v1117 = vadd.f32 %v1115, %v1116
    %v1118 = vrot.slane %v1117, 1
    %v1119 = vadd.f32 %v1117, %v1118
    %v1120 = vadd.f32 %v1076, %v1078
    %v1121 = vadd.f32 %v1120, %v1080
    %v1122 = vadd.f32 %v1121, %v1082
    %v1123 = vadd.f32 %v1122, %v1084
    %v1124 = vadd.f32 %v1123, %v1086
    %v1125 = vadd.f32 %v1124, %v1088
    %v1126 = vadd.f32 %v1125, %v1090
    %v1127 = vrot.slane %v1126, 4
    %v1128 = vadd.f32 %v1126, %v1127
    %v1129 = vrot.slane %v1128, 2
    %v1130 = vadd.f32 %v1128, %v1129
    %v1131 = vrot.slane %v1130, 1
    %v1132 = vadd.f32 %v1130, %v1131
    %v1133 = vadd.f32 %v1091, %v1093
    %v1134 = vadd.f32 %v1133, %v1095
    %v1135 = vadd.f32 %v1134, %v1097
    %v1136 = vadd.f32 %v1135, %v1099
    %v1137 = vadd.f32 %v1136, %v1101
    %v1138 = vadd.f32 %v1137, %v1103
    %v1139 = vadd.f32 %v1138, %v1105
    %v1140 = vrot.slane %v1139, 4
    %v1141 = vadd.f32 %v1139, %v1140
    %v1142 = vrot.slane %v1141, 2
    %v1143 = vadd.f32 %v1141, %v1142
    %v1144 = vrot.slane %v1143, 1
    %v1145 = vadd.f32 %v1143, %v1144
    %v1146 = vadd.f32 %v1092, %v1094
    %v1147 = vadd.f32 %v1146, %v1096
    %v1148 = vadd.f32 %v1147, %v1098
    %v1149 = vadd.f32 %v1148, %v1100
    %v1150 = vadd.f32 %v1149, %v1102
    %v1151 = vadd.f32 %v1150, %v1104
    %v1152 = vadd.f32 %v1151, %v1106
    %v1153 = vrot.slane %v1152, 4
    %v1154 = vadd.f32 %v1152, %v1153
    %v1155 = vrot.slane %v1154, 2
    %v1156 = vadd.f32 %v1154, %v1155
    %v1157 = vrot.slane %v1156, 1
    %v1158 = vadd.f32 %v1156, %v1157
    %s1159 = smul.u32 4, 32
    %s1160 = smul.u32 %s1159, 2
    %s1161 = sshll.u32 %s1160, 4
    %1162 = dma.done [#allocation3], %s1161
    %v1163 = vpack.c.bf16 %v1119, %v1119
    %v1164 = vpack.c.bf16 %v1132, %v1132
    %v1165 = vpack.c.bf16 %v1145, %v1145
    %v1166 = vpack.c.bf16 %v1158, %v1158
    %v1167 = vld [vmem:[#allocation2] sm:$0xff]
    %v1168 = vld [vmem:[#allocation2 + $0x8] sm:$0xff]
    %v1169 = vld [vmem:[#allocation2 + $0x10] sm:$0xff]
    %v1170 = vld [vmem:[#allocation2 + $0x18] sm:$0xff]
    %v1171 = vld [vmem:[#allocation2 + $0x20] sm:$0xff]
    %v1172 = vld [vmem:[#allocation2 + $0x28] sm:$0xff]
    %v1173 = vld [vmem:[#allocation2 + $0x30] sm:$0xff]
    %v1174 = vld [vmem:[#allocation2 + $0x38] sm:$0xff]
    %v1175 = vld [vmem:[#allocation2 + $0x40] sm:$0xff]
    %v1176 = vld [vmem:[#allocation2 + $0x48] sm:$0xff]
    %v1177 = vld [vmem:[#allocation2 + $0x50] sm:$0xff]
    %v1178 = vld [vmem:[#allocation2 + $0x58] sm:$0xff]
    %v1179 = vld [vmem:[#allocation2 + $0x60] sm:$0xff]
    %v1180 = vld [vmem:[#allocation2 + $0x68] sm:$0xff]
    %v1181 = vld [vmem:[#allocation2 + $0x70] sm:$0xff]
    %v1182 = vld [vmem:[#allocation2 + $0x78] sm:$0xff]
    %v1183 = vld [vmem:[#allocation2 + $0x80] sm:$0xff]
    %v1184 = vld [vmem:[#allocation2 + $0x88] sm:$0xff]
    %v1185 = vld [vmem:[#allocation2 + $0x90] sm:$0xff]
    %v1186 = vld [vmem:[#allocation2 + $0x98] sm:$0xff]
    %v1187 = vld [vmem:[#allocation2 + $0xa0] sm:$0xff]
    %v1188 = vld [vmem:[#allocation2 + $0xa8] sm:$0xff]
    %v1189 = vld [vmem:[#allocation2 + $0xb0] sm:$0xff]
    %v1190 = vld [vmem:[#allocation2 + $0xb8] sm:$0xff]
    %v1191 = vld [vmem:[#allocation2 + $0xc0] sm:$0xff]
    %v1192 = vld [vmem:[#allocation2 + $0xc8] sm:$0xff]
    %v1193 = vld [vmem:[#allocation2 + $0xd0] sm:$0xff]
    %v1194 = vld [vmem:[#allocation2 + $0xd8] sm:$0xff]
    %v1195 = vld [vmem:[#allocation2 + $0xe0] sm:$0xff]
    %v1196 = vld [vmem:[#allocation2 + $0xe8] sm:$0xff]
    %v1197 = vld [vmem:[#allocation2 + $0xf0] sm:$0xff]
    %v1198 = vld [vmem:[#allocation2 + $0xf8] sm:$0xff]
    %s1199 = scalar_lea.vmem %s2, 3
    %v1200 = vld [vmem:[%s1199] ss:$8 sm:$0x3]
    %v1202 = vlaneseq
    %v1203 = vshrl.u32 %v1202, 7
    %v1204 = vsub.s32 0, %v1203
    %v1205 = vrot.slane %v1200, %v1204
    %v1206 = vlaneseq
    %v1207 = vshrl.u32 %v1206, 7
    %v1208 = vsub.s32 1, %v1207
    %v1209 = vrot.slane %v1200, %v1208
    %v1216 = vunpack.c.l.b16 %v1163
    %v1217 = vunpack.c.l.b16 %v1164
    %v1218 = vunpack.c.l.b16 %v1165
    %v1219 = vunpack.c.l.b16 %v1166
    %vm1220 = vcmask 1041409
    %v1221 = vsel %vm1220, %v1218, %v1216
    %v1222 = vsel %vm1220, %v1219, %v1217
    %v1223 = vpack.c.b16 %v1221, %v1221
    %v1224 = vpack.c.b16 %v1222, %v1222
    %1227 = vmatprep.subr.bf16.mxu0 %v1168
    %1228 = vmatpush1.bf16.msra.mxu0 %v1167
    %1229 = vmatprep.subr.bf16.mxu0 %v1170
    %1230 = vmatpush1.bf16.msra.mxu0 %v1169
    %1231 = vmatprep.subr.bf16.mxu0 %v1172
    %1232 = vmatpush1.bf16.msra.mxu0 %v1171
    %1233 = vmatprep.subr.bf16.mxu0 %v1174
    %1234 = vmatpush1.bf16.msra.mxu0 %v1173
    %1235 = vmatprep.subr.bf16.mxu0 %v1176
    %1236 = vmatpush1.bf16.msra.mxu0 %v1175
    %1237 = vmatprep.subr.bf16.mxu0 %v1178
    %1238 = vmatpush1.bf16.msra.mxu0 %v1177
    %1239 = vmatprep.subr.bf16.mxu0 %v1180
    %1240 = vmatpush1.bf16.msra.mxu0 %v1179
    %1241 = vmatprep.subr.bf16.mxu0 %v1182
    %1242 = vmatpush1.bf16.msra.mxu0 %v1181
    %1243 = vmatprep.subr.bf16.mxu0 %v1184
    %1244 = vmatpush1.bf16.msra.mxu0 %v1183
    %1245 = vmatprep.subr.bf16.mxu0 %v1186
    %1246 = vmatpush1.bf16.msra.mxu0 %v1185
    %1247 = vmatprep.subr.bf16.mxu0 %v1188
    %1248 = vmatpush1.bf16.msra.mxu0 %v1187
    %1249 = vmatprep.subr.bf16.mxu0 %v1190
    %1250 = vmatpush1.bf16.msra.mxu0 %v1189
    %1251 = vmatprep.subr.bf16.mxu0 %v1192
    %1252 = vmatpush1.bf16.msra.mxu0 %v1191
    %1253 = vmatprep.subr.bf16.mxu0 %v1194
    %1254 = vmatpush1.bf16.msra.mxu0 %v1193
    %1255 = vmatprep.subr.bf16.mxu0 %v1196
    %1256 = vmatpush1.bf16.msra.mxu0 %v1195
    %1257 = vmatprep.subr.bf16.mxu0 %v1198
    %1258 = vmatpush1.bf16.msra.mxu0 %v1197
    %1259 = vmatprep.mubr.bf16.mxu0 %v1224
    %1260 = vmatmul.mubr.bf16.gmra.mrb[0].mxu0 %v1223
    %v1261 = vpop.f32.mrb[0].mxu0
    %v1262 = vadd.f32 %v1205, %v1261
    %v1263 = vpop.f32.mrb[0].mxu0
    %v1264 = vadd.f32 %v1209, %v1263
    %v1265 = vpop.f32.mrb[0].mxu0
    %v1266 = vpop.f32.mrb[0].mxu0
    %1267 = vdwg.mxu0
    %v1268 = vmax.f32 %v1262, 0.0
    %v1269 = vmax.f32 %v1264, 0.0
    %s1270 = sshll.u32 %s1160, 4
    %1271 = dma.done %s53, %s1270
    %v1272 = vpack.c.bf16 %v1268, %v1268
    %v1273 = vpack.c.bf16 %v1269, %v1269
    %v1274 = vld [vmem:[%s52] sm:$0xff]
    %v1275 = vld [vmem:[%s52 + $0x8] sm:$0xff]
    %v1276 = vld [vmem:[%s52 + $0x10] sm:$0xff]
    %v1277 = vld [vmem:[%s52 + $0x18] sm:$0xff]
    %v1278 = vld [vmem:[%s52 + $0x20] sm:$0xff]
    %v1279 = vld [vmem:[%s52 + $0x28] sm:$0xff]
    %v1280 = vld [vmem:[%s52 + $0x30] sm:$0xff]
    %v1281 = vld [vmem:[%s52 + $0x38] sm:$0xff]
    %v1282 = vld [vmem:[%s52 + $0x40] sm:$0xff]
    %v1283 = vld [vmem:[%s52 + $0x48] sm:$0xff]
    %v1284 = vld [vmem:[%s52 + $0x50] sm:$0xff]
    %v1285 = vld [vmem:[%s52 + $0x58] sm:$0xff]
    %v1286 = vld [vmem:[%s52 + $0x60] sm:$0xff]
    %v1287 = vld [vmem:[%s52 + $0x68] sm:$0xff]
    %v1288 = vld [vmem:[%s52 + $0x70] sm:$0xff]
    %v1289 = vld [vmem:[%s52 + $0x78] sm:$0xff]
    %v1290 = vld [vmem:[%s52 + $0x80] sm:$0xff]
    %v1291 = vld [vmem:[%s52 + $0x88] sm:$0xff]
    %v1292 = vld [vmem:[%s52 + $0x90] sm:$0xff]
    %v1293 = vld [vmem:[%s52 + $0x98] sm:$0xff]
    %v1294 = vld [vmem:[%s52 + $0xa0] sm:$0xff]
    %v1295 = vld [vmem:[%s52 + $0xa8] sm:$0xff]
    %v1296 = vld [vmem:[%s52 + $0xb0] sm:$0xff]
    %v1297 = vld [vmem:[%s52 + $0xb8] sm:$0xff]
    %v1298 = vld [vmem:[%s52 + $0xc0] sm:$0xff]
    %v1299 = vld [vmem:[%s52 + $0xc8] sm:$0xff]
    %v1300 = vld [vmem:[%s52 + $0xd0] sm:$0xff]
    %v1301 = vld [vmem:[%s52 + $0xd8] sm:$0xff]
    %v1302 = vld [vmem:[%s52 + $0xe0] sm:$0xff]
    %v1303 = vld [vmem:[%s52 + $0xe8] sm:$0xff]
    %v1304 = vld [vmem:[%s52 + $0xf0] sm:$0xff]
    %v1305 = vld [vmem:[%s52 + $0xf8] sm:$0xff]
    %s1306 = scalar_lea.vmem %s2, 4
    %v1307 = vld [vmem:[%s1306] ss:$8 sm:$0x3]
    %v1309 = vlaneseq
    %v1310 = vshrl.u32 %v1309, 7
    %v1311 = vsub.s32 0, %v1310
    %v1312 = vrot.slane %v1307, %v1311
    %v1313 = vlaneseq
    %v1314 = vshrl.u32 %v1313, 7
    %v1315 = vsub.s32 1, %v1314
    %v1316 = vrot.slane %v1307, %v1315
    %1319 = vmatprep.subr.bf16.mxu0 %v1275
    %1320 = vmatpush1.bf16.msra.mxu0 %v1274
    %1321 = vmatprep.subr.bf16.mxu0 %v1277
    %1322 = vmatpush1.bf16.msra.mxu0 %v1276
    %1323 = vmatprep.subr.bf16.mxu0 %v1279
    %1324 = vmatpush1.bf16.msra.mxu0 %v1278
    %1325 = vmatprep.subr.bf16.mxu0 %v1281
    %1326 = vmatpush1.bf16.msra.mxu0 %v1280
    %1327 = vmatprep.subr.bf16.mxu0 %v1283
    %1328 = vmatpush1.bf16.msra.mxu0 %v1282
    %1329 = vmatprep.subr.bf16.mxu0 %v1285
    %1330 = vmatpush1.bf16.msra.mxu0 %v1284
    %1331 = vmatprep.subr.bf16.mxu0 %v1287
    %1332 = vmatpush1.bf16.msra.mxu0 %v1286
    %1333 = vmatprep.subr.bf16.mxu0 %v1289
    %1334 = vmatpush1.bf16.msra.mxu0 %v1288
    %1335 = vmatprep.subr.bf16.mxu0 %v1291
    %1336 = vmatpush1.bf16.msra.mxu0 %v1290
    %1337 = vmatprep.subr.bf16.mxu0 %v1293
    %1338 = vmatpush1.bf16.msra.mxu0 %v1292
    %1339 = vmatprep.subr.bf16.mxu0 %v1295
    %1340 = vmatpush1.bf16.msra.mxu0 %v1294
    %1341 = vmatprep.subr.bf16.mxu0 %v1297
    %1342 = vmatpush1.bf16.msra.mxu0 %v1296
    %1343 = vmatprep.subr.bf16.mxu0 %v1299
    %1344 = vmatpush1.bf16.msra.mxu0 %v1298
    %1345 = vmatprep.subr.bf16.mxu0 %v1301
    %1346 = vmatpush1.bf16.msra.mxu0 %v1300
    %1347 = vmatprep.subr.bf16.mxu0 %v1303
    %1348 = vmatpush1.bf16.msra.mxu0 %v1302
    %1349 = vmatprep.subr.bf16.mxu0 %v1305
    %1350 = vmatpush1.bf16.msra.mxu0 %v1304
    %1351 = vmatprep.mubr.bf16.mxu0 %v1273
    %1352 = vmatmul.mubr.bf16.gmra.mrb[0].mxu0 %v1272
    %v1353 = vpop.f32.mrb[0].mxu0
    %v1354 = vadd.f32 %v1312, %v1353
    %v1355 = vpop.f32.mrb[0].mxu0
    %v1356 = vadd.f32 %v1316, %v1355
    %v1357 = vpop.f32.mrb[0].mxu0
    %v1358 = vpop.f32.mrb[0].mxu0
    %1359 = vdwg.mxu0
    %v1360 = vmax.f32 %v1354, 0.0
    %v1361 = vmax.f32 %v1356, 0.0
    %s1362 = sshll.u32 %s1160, 4
    %1363 = dma.done %s90, %s1362
    %v1364 = vpack.c.bf16 %v1360, %v1360
    %v1365 = vpack.c.bf16 %v1361, %v1361
    %v1366 = vld [vmem:[%s89] sm:$0xff]
    %v1367 = vld [vmem:[%s89 + $0x8] sm:$0xff]
    %v1368 = vld [vmem:[%s89 + $0x10] sm:$0xff]
    %v1369 = vld [vmem:[%s89 + $0x18] sm:$0xff]
    %v1370 = vld [vmem:[%s89 + $0x20] sm:$0xff]
    %v1371 = vld [vmem:[%s89 + $0x28] sm:$0xff]
    %v1372 = vld [vmem:[%s89 + $0x30] sm:$0xff]
    %v1373 = vld [vmem:[%s89 + $0x38] sm:$0xff]
    %v1374 = vld [vmem:[%s89 + $0x40] sm:$0xff]
    %v1375 = vld [vmem:[%s89 + $0x48] sm:$0xff]
    %v1376 = vld [vmem:[%s89 + $0x50] sm:$0xff]
    %v1377 = vld [vmem:[%s89 + $0x58] sm:$0xff]
    %v1378 = vld [vmem:[%s89 + $0x60] sm:$0xff]
    %v1379 = vld [vmem:[%s89 + $0x68] sm:$0xff]
    %v1380 = vld [vmem:[%s89 + $0x70] sm:$0xff]
    %v1381 = vld [vmem:[%s89 + $0x78] sm:$0xff]
    %v1382 = vld [vmem:[%s89 + $0x80] sm:$0xff]
    %v1383 = vld [vmem:[%s89 + $0x88] sm:$0xff]
    %v1384 = vld [vmem:[%s89 + $0x90] sm:$0xff]
    %v1385 = vld [vmem:[%s89 + $0x98] sm:$0xff]
    %v1386 = vld [vmem:[%s89 + $0xa0] sm:$0xff]
    %v1387 = vld [vmem:[%s89 + $0xa8] sm:$0xff]
    %v1388 = vld [vmem:[%s89 + $0xb0] sm:$0xff]
    %v1389 = vld [vmem:[%s89 + $0xb8] sm:$0xff]
    %v1390 = vld [vmem:[%s89 + $0xc0] sm:$0xff]
    %v1391 = vld [vmem:[%s89 + $0xc8] sm:$0xff]
    %v1392 = vld [vmem:[%s89 + $0xd0] sm:$0xff]
    %v1393 = vld [vmem:[%s89 + $0xd8] sm:$0xff]
    %v1394 = vld [vmem:[%s89 + $0xe0] sm:$0xff]
    %v1395 = vld [vmem:[%s89 + $0xe8] sm:$0xff]
    %v1396 = vld [vmem:[%s89 + $0xf0] sm:$0xff]
    %v1397 = vld [vmem:[%s89 + $0xf8] sm:$0xff]
    %s1398 = scalar_lea.vmem %s2, 5
    %v1399 = vld [vmem:[%s1398] ss:$8 sm:$0x3]
    %v1401 = vlaneseq
    %v1402 = vshrl.u32 %v1401, 7
    %v1403 = vsub.s32 0, %v1402
    %v1404 = vrot.slane %v1399, %v1403
    %v1405 = vlaneseq
    %v1406 = vshrl.u32 %v1405, 7
    %v1407 = vsub.s32 1, %v1406
    %v1408 = vrot.slane %v1399, %v1407
    %1411 = vmatprep.subr.bf16.mxu0 %v1367
    %1412 = vmatpush1.bf16.msra.mxu0 %v1366
    %1413 = vmatprep.subr.bf16.mxu0 %v1369
    %1414 = vmatpush1.bf16.msra.mxu0 %v1368
    %1415 = vmatprep.subr.bf16.mxu0 %v1371
    %1416 = vmatpush1.bf16.msra.mxu0 %v1370
    %1417 = vmatprep.subr.bf16.mxu0 %v1373
    %1418 = vmatpush1.bf16.msra.mxu0 %v1372
    %1419 = vmatprep.subr.bf16.mxu0 %v1375
    %1420 = vmatpush1.bf16.msra.mxu0 %v1374
    %1421 = vmatprep.subr.bf16.mxu0 %v1377
    %1422 = vmatpush1.bf16.msra.mxu0 %v1376
    %1423 = vmatprep.subr.bf16.mxu0 %v1379
    %1424 = vmatpush1.bf16.msra.mxu0 %v1378
    %1425 = vmatprep.subr.bf16.mxu0 %v1381
    %1426 = vmatpush1.bf16.msra.mxu0 %v1380
    %1427 = vmatprep.subr.bf16.mxu0 %v1383
    %1428 = vmatpush1.bf16.msra.mxu0 %v1382
    %1429 = vmatprep.subr.bf16.mxu0 %v1385
    %1430 = vmatpush1.bf16.msra.mxu0 %v1384
    %1431 = vmatprep.subr.bf16.mxu0 %v1387
    %1432 = vmatpush1.bf16.msra.mxu0 %v1386
    %1433 = vmatprep.subr.bf16.mxu0 %v1389
    %1434 = vmatpush1.bf16.msra.mxu0 %v1388
    %1435 = vmatprep.subr.bf16.mxu0 %v1391
    %1436 = vmatpush1.bf16.msra.mxu0 %v1390
    %1437 = vmatprep.subr.bf16.mxu0 %v1393
    %1438 = vmatpush1.bf16.msra.mxu0 %v1392
    %1439 = vmatprep.subr.bf16.mxu0 %v1395
    %1440 = vmatpush1.bf16.msra.mxu0 %v1394
    %1441 = vmatprep.subr.bf16.mxu0 %v1397
    %1442 = vmatpush1.bf16.msra.mxu0 %v1396
    %1443 = vmatprep.mubr.bf16.mxu0 %v1365
    %1444 = vmatmul.mubr.bf16.gmra.mrb[0].mxu0 %v1364
    %v1445 = vpop.f32.mrb[0].mxu0
    %v1446 = vadd.f32 %v1404, %v1445
    %v1447 = vpop.f32.mrb[0].mxu0
    %v1448 = vadd.f32 %v1408, %v1447
    %v1449 = vpop.f32.mrb[0].mxu0
    %v1450 = vpop.f32.mrb[0].mxu0
    %1451 = vdwg.mxu0
    %v1452 = vmax.f32 %v1446, 0.0
    %v1453 = vmax.f32 %v1448, 0.0
    %v1454 = vld [vmem:[%s1 + $0x210] sm:$0xff]
    %v1455 = vld [vmem:[%s1 + $0x218] sm:$0xff]
    %v1456 = vld [vmem:[%s1 + $0x220] sm:$0xff]
    %v1457 = vld [vmem:[%s1 + $0x228] sm:$0xff]
    %v1458 = vpack.c.bf16 %v1452, %v1452
    %v1459 = vpack.c.bf16 %v1453, %v1453
    %v1460 = vld [vmem:[%s2 + $0x6] ss:$0 sm:$0xff]
    %v1465 = vunpack.c.l.b16 %v1454
    %v1466 = vunpack.c.h.b16 %v1454
    %v1467 = vunpack.c.l.b16 %v1455
    %v1468 = vunpack.c.h.b16 %v1455
    %v1469 = vunpack.c.l.b16 %v1456
    %v1470 = vunpack.c.h.b16 %v1456
    %v1471 = vunpack.c.l.b16 %v1457
    %v1472 = vunpack.c.h.b16 %v1457
    %v1473 = vpack.c.b16 %v1467, %v1465
    %v1474 = vpack.c.b16 %v1468, %v1466
    %v1475 = vpack.c.b16 %v1471, %v1469
    %v1476 = vpack.c.b16 %v1472, %v1470
    %1481 = vmatprep.subr.bf16.mxu0 %v1474
    %1482 = vmatpush1.bf16.xpose.msra.mxu0 %v1473
    %1483 = vmatprep.subr.bf16.mxu0 %v1476
    %1484 = vmatpush1.bf16.xpose.msra.mxu0 %v1475
    %1485 = vmatprep.subr.bf16.mxu0 0
    %1486 = vmatpush1.bf16.xpose.msra.mxu0 0
    %1487 = vmatprep.subr.bf16.mxu0 0
    %1488 = vmatpush1.bf16.xpose.msra.mxu0 0
    %1489 = vmatprep.subr.bf16.mxu0 0
    %1490 = vmatpush1.bf16.xpose.msra.mxu0 0
    %1491 = vmatprep.subr.bf16.mxu0 0
    %1492 = vmatpush1.bf16.xpose.msra.mxu0 0
    %1493 = vmatprep.subr.bf16.mxu0 0
    %1494 = vmatpush1.bf16.xpose.msra.mxu0 0
    %1495 = vmatprep.subr.bf16.mxu0 0
    %1496 = vmatpush1.bf16.xpose.msra.mxu0 0
    %1497 = vmatprep.subr.bf16.mxu0 0
    %1498 = vmatpush1.bf16.xpose.msra.mxu0 0
    %1499 = vmatprep.subr.bf16.mxu0 0
    %1500 = vmatpush1.bf16.xpose.msra.mxu0 0
    %1501 = vmatprep.subr.bf16.mxu0 0
    %1502 = vmatpush1.bf16.xpose.msra.mxu0 0
    %1503 = vmatprep.subr.bf16.mxu0 0
    %1504 = vmatpush1.bf16.xpose.msra.mxu0 0
    %1505 = vmatprep.subr.bf16.mxu0 0
    %1506 = vmatpush1.bf16.xpose.msra.mxu0 0
    %1507 = vmatprep.subr.bf16.mxu0 0
    %1508 = vmatpush1.bf16.xpose.msra.mxu0 0
    %1509 = vmatprep.subr.bf16.mxu0 0
    %1510 = vmatpush1.bf16.xpose.msra.mxu0 0
    %1511 = vmatprep.subr.bf16.mxu0 0
    %1512 = vmatpush1.bf16.xpose.msra.mxu0 0
    %1513 = vmatprep.mubr.bf16.mxu0 %v1459
    %1514 = vmatmul.mubr.bf16.gmra.mrb[0].mxu0 %v1458
    %v1515 = vpop.f32.mrb[0].mxu0
    %v1516 = vadd.f32 %v1460, %v1515
    %v1517 = vpop.f32.mrb[0].mxu0
    %v1518 = vpop.f32.mrb[0].mxu0
    %v1519 = vpop.f32.mrb[0].mxu0
    %1520 = vdwg.mxu0
    %v1521 = vmax.f32 %v1516, 0.0
    %v1522 = vld [vmem:[%s2 + $0x7] ss:$0 sm:$0xff]
    %v1523 = vmul.f32 %v1521, %v1522
    %vm1524 = vcmask 254976
    %v1525 = vsel %vm1524, %v1523, 0.0
    %1526 = vadd.xlane.f32.xlu0 %v1525
    %v1527 = vpop.xlane.xlu0 %1526
    %v1528 = vld [vmem:[%s2 + $0x10] ss:$0 sm:$0xff]
    %v1529 = vadd.f32 %v1527, %v1528
    %v1530 = vmul.f32 %v1529, 0.5
    %v1531 = vtanh.pop %v1530
    %v1532 = vadd.f32 %v1531, 1.0
    %v1533 = vmul.f32 %v1532, 0.5
    %1535 = vrot.lane.b32.xlu0 %v1529, 1
    %v1536 = vpop.permute.xlu0 %1535
    %vm1538 = vcmask 7168
    %v1539 = vsel %vm1538, %v1533, %v1536
    %vm1540 = vcmask 9216
    %1541 = vst.msk [vmem:[%s4] sm:$0x3] %vm1540, %v1539
    // Predicated region
    $region14: #{_lambda_.1} parent=1 // pred_check
      _
    $region15: #{_lambda_.1} parent=1 // pred_check_branch
      %1543 = sbr.rel (0) target = $region17
    $region16: #{_lambda_.1} parent=1 // pred_region
      _
    $region17: #{_lambda_.1} parent=1 // pred_fallthru
      _
    // Predicated region
    $region18: #{_lambda_.1} parent=1 // pred_check
      _
    $region19: #{_lambda_.1} parent=1 // pred_check_branch
      %1545 = sbr.rel (0) target = $region21
    $region20: #{_lambda_.1} parent=1 // pred_region
      _
    $region21: #{_lambda_.1} parent=1 // pred_fallthru
      _
  %1546 = vsyncmov [#allocation3]
  %s1547 = vpop.sfrf %1546
  %p1548 = scmp.eq.s32.totalorder %s1547, 0
  %p1549 = pneg %p1548
  %1551 = shalt.err (%p1549)
  %s1552 = scalar_lea.sflag [#allocation3], 1
  %1553 = vsyncmov %s1552
  %s1554 = vpop.sfrf %1553
  %p1555 = scmp.eq.s32.totalorder %s1554, 0
  %p1556 = pneg %p1555
  %1558 = shalt.err (%p1556)
  %s1559 = scalar_lea.sflag [#allocation3], 2
  %1560 = vsyncmov %s1559
  %s1561 = vpop.sfrf %1560
  %p1562 = scmp.eq.s32.totalorder %s1561, 0
  %p1563 = pneg %p1562
  %1565 = shalt.err (%p1563)

</llo_original>
